<compile_context>
chip_gen: v7x
topology: tpu7x:2x2x1
jax: 0.10.0
libtpu: 0.0.40
codegen_flags: <defaults>
</compile_context>

<pallas_src>
import functools

import jax
import jax.numpy as jnp
from jax.experimental import pallas as pl
from jax.experimental.pallas import tpu as pltpu


# ----------------------------------------------------------------------------- kernel
def _resblock_kernel(x_ref, w_a_ref, b_a_ref, w2_ref, b2_ref, out_ref, *,
                     n_neurons, has_fc3, final_nl):
    f32 = jnp.float32
    xf = x_ref[...]                                   # (tb, Fin) f32
    xb = xf.astype(jnp.bfloat16)                      # cast once; MXU runs native bf16

    # Fused fc1(+folded bn1) and (optional) fc3 shortcut: one MXU pass, slice after.
    h = jnp.dot(xb, w_a_ref[...], preferred_element_type=f32) + b_a_ref[...]
    h1 = jnp.maximum(h[:, :n_neurons], 0.0)           # relu(bn1(fc1(x)))
    if has_fc3:
        xin = jnp.maximum(h[:, n_neurons:], 0.0)      # Xin = relu(fc3(x))
    else:
        xin = xf                                      # Xin = x (identity shortcut, f32)

    # fc2(+folded bn2), residual add, optional final ReLU.
    out = xin + (jnp.dot(h1.astype(jnp.bfloat16), w2_ref[...],
                         preferred_element_type=f32) + b2_ref[...])
    if final_nl:
        out = jnp.maximum(out, 0.0)
    out_ref[...] = out


# ----------------------------------------------------------------------------- wrapper
def resblock_forward(x, kp, *, final_nl=True, tb=64):
    """x: (B, Fin) f32 -> (B, Fout) f32, matching ResBlock.forward(x, final_nl)."""
    B, Fin = x.shape
    n_neurons = kp['n_neurons']
    Fout = kp['w2'].shape[1]
    has_fc3 = kp['has_fc3']
    assert kp['w_a'].shape[0] == Fin

    tb = min(tb, B)
    assert B % tb == 0, "batch must be divisible by the row tile"

    kernel = functools.partial(_resblock_kernel,
                               n_neurons=n_neurons,
                               has_fc3=has_fc3,
                               final_nl=final_nl)

    const = lambda i: (0, 0)
    in_specs = [
        pl.BlockSpec((tb, Fin), lambda i: (i, 0)),      # x tile (streamed over batch)
        pl.BlockSpec(kp['w_a'].shape, const),           # fused fc1/fc3 weight (bf16)
        pl.BlockSpec(kp['b_a'].shape, const),           # fused bias (f32)
        pl.BlockSpec(kp['w2'].shape, const),            # fc2 weight (bf16)
        pl.BlockSpec(kp['b2'].shape, const),            # fc2 bias (f32)
    ]
    out_specs = pl.BlockSpec((tb, Fout), lambda i: (i, 0))
    out_shape = jax.ShapeDtypeStruct((B, Fout), jnp.float32)

    fn = pl.pallas_call(
        kernel,
        out_shape=out_shape,
        grid_spec=pltpu.PrefetchScalarGridSpec(
            num_scalar_prefetch=0,
            grid=(B // tb,),
            in_specs=in_specs,
            out_specs=out_specs),
        compiler_params=pltpu.CompilerParams(
            dimension_semantics=("parallel",),
            vmem_limit_bytes=32 * 1024 * 1024),
    )
    return fn(x, kp['w_a'], kp['b_a'], kp['w2'], kp['b2'])


# ------------------------------------------------------------------- parameter setup (glue)
def make_raw_params(key, Fin, Fout, n_neurons=256, norm='bn'):
    """PyTorch-layout parameters: Linear weights are (out, in)."""
    ks = iter(jax.random.split(key, 16))

    def lin(co, ci):
        w = jax.random.normal(next(ks), (co, ci), jnp.float32) / jnp.sqrt(ci)
        b = 0.02 * jax.random.normal(next(ks), (co,), jnp.float32)
        return w, b

    def bn(c):
        if norm != 'bn':
            return None
        gamma = 1.0 + 0.05 * jax.random.normal(next(ks), (c,), jnp.float32)
        beta = 0.05 * jax.random.normal(next(ks), (c,), jnp.float32)
        mean = 0.05 * jax.random.normal(next(ks), (c,), jnp.float32)
        var = 1.0 + 0.1 * jax.random.uniform(next(ks), (c,), jnp.float32)
        return gamma, beta, mean, var

    raw = {'Fin': Fin, 'Fout': Fout, 'n_neurons': n_neurons}
    raw['w1'], raw['b1'] = lin(n_neurons, Fin)
    raw['bn1'] = bn(n_neurons)
    raw['w2'], raw['b2'] = lin(Fout, n_neurons)
    raw['bn2'] = bn(Fout)
    if Fin != Fout:
        raw['w3'], raw['b3'] = lin(Fout, Fin)
    return raw


def fold_params(raw, eps=1e-5):
    """Fold eval-mode BN into the linears, fuse fc1/fc3, cast weights to bf16."""
    def fold(w, b, bnp):
        if bnp is None:
            return w, b
        g, be, m, v = bnp
        s = g / jnp.sqrt(v + eps)
        return w * s[:, None], (b - m) * s + be

    w1, b1 = fold(raw['w1'], raw['b1'], raw['bn1'])     # (nh, Fin)
    w2, b2 = fold(raw['w2'], raw['b2'], raw['bn2'])     # (Fout, nh)

    if 'w3' in raw:                                      # Fin != Fout: fuse fc1 and fc3
        w_a = jnp.concatenate([w1, raw['w3']], axis=0)   # (nh + Fout, Fin)
        b_a = jnp.concatenate([b1, raw['b3']], axis=0)
        has_fc3 = True
    else:
        w_a, b_a = w1, b1                                # (nh, Fin)
        has_fc3 = False

    return dict(
        w_a=jnp.asarray(w_a.T, jnp.bfloat16),            # (Fin, nh[+Fout]) for x @ W
        b_a=b_a.reshape(1, -1).astype(jnp.float32),
        w2=jnp.asarray(w2.T, jnp.bfloat16),              # (nh, Fout)
        b2=b2.reshape(1, -1).astype(jnp.float32),
        n_neurons=raw['n_neurons'],
        has_fc3=has_fc3,
    )


# --------------------------------------------------------------------- pure-JAX reference
def resblock_reference(x, raw, final_nl=True, eps=1e-5):
    def bn_eval(y, bnp):
        if bnp is None:
            return y
        g, be, m, v = bnp
        return g * (y - m) / jnp.sqrt(v + eps) + be

    h = jax.nn.relu(bn_eval(x @ raw['w1'].T + raw['b1'], raw['bn1']))
    out = bn_eval(h @ raw['w2'].T + raw['b2'], raw['bn2'])
    xin = jax.nn.relu(x @ raw['w3'].T + raw['b3']) if 'w3' in raw else x
    out = xin + out
    return jax.nn.relu(out) if final_nl else out


if __name__ == "__main__":
    key = jax.random.PRNGKey(0)
    kx1, kx2, kp1, kp2 = jax.random.split(key, 4)

    # Case 1: Fin != Fout -> fc3 shortcut is active, final_nl=True
    B, Fin, Fout, NH = 128, 512, 256, 256
    x1 = jax.random.normal(kx1, (B, Fin), jnp.float32)
    raw1 = make_raw_params(kp1, Fin, Fout, NH, norm='bn')
    y1 = resblock_forward(x1, fold_params(raw1), final_nl=True, tb=64)
    jax.block_until_ready(y1)
    y1_ref = resblock_reference(x1, raw1, final_nl=True)
    assert y1.shape == (B, Fout)
    assert jnp.allclose(y1, y1_ref, atol=6e-2, rtol=6e-2), \
        float(jnp.max(jnp.abs(y1 - y1_ref)))

    # Case 2: Fin == Fout -> identity shortcut, final_nl=False
    Fin2 = Fout2 = 256
    x2 = jax.random.normal(kx2, (B, Fin2), jnp.float32)
    raw2 = make_raw_params(kp2, Fin2, Fout2, NH, norm='bn')
    y2 = resblock_forward(x2, fold_params(raw2), final_nl=False, tb=64)
    jax.block_until_ready(y2)
    y2_ref = resblock_reference(x2, raw2, final_nl=False)
    assert y2.shape == (B, Fout2)
    assert jnp.allclose(y2, y2_ref, atol=6e-2, rtol=6e-2), \
        float(jnp.max(jnp.abs(y2 - y2_ref)))

    print("KERNEL_OK")
</pallas_src>

<mosaic_0001>
module attributes {stable_mosaic.version = 11 : i64} {
  func.func @_resblock_kernel(%arg0: i32, %arg1: memref<64x512xf32, #tpu.memory_space<vmem>>, %arg2: memref<512x512xbf16, #tpu.memory_space<vmem>>, %arg3: memref<1x512xf32, #tpu.memory_space<vmem>>, %arg4: memref<256x256xbf16, #tpu.memory_space<vmem>>, %arg5: memref<1x256xf32, #tpu.memory_space<vmem>>, %arg6: memref<64x256xf32, #tpu.memory_space<vmem>>) attributes {dimension_semantics = [#tpu.dimension_semantics<parallel>], iteration_bounds = array<i64: 2>, scalar_prefetch = 0 : i64, scratch_operands = 0 : i64, tpu.core_type = #tpu.core_type<tc>, window_params = [{transform_indices = @transform_0, window_bounds = array<i64: 64, 512>}, {pipeline_mode = #tpu.pipeline_mode<synchronous>, transform_indices = @transform_1, window_bounds = array<i64: 512, 512>}, {pipeline_mode = #tpu.pipeline_mode<synchronous>, transform_indices = @transform_2, window_bounds = array<i64: 1, 512>}, {pipeline_mode = #tpu.pipeline_mode<synchronous>, transform_indices = @transform_3, window_bounds = array<i64: 256, 256>}, {pipeline_mode = #tpu.pipeline_mode<synchronous>, transform_indices = @transform_4, window_bounds = array<i64: 1, 256>}, {transform_indices = @transform_5, window_bounds = array<i64: 64, 256>}]} {
    %c0 = arith.constant 0 : index
    %c0_0 = arith.constant 0 : index
    %0 = vector.load %arg1[%c0, %c0_0] : memref<64x512xf32, #tpu.memory_space<vmem>>, vector<64x512xf32>
    %1 = arith.truncf %0 : vector<64x512xf32> to vector<64x512xbf16>
    %c0_1 = arith.constant 0 : index
    %c0_2 = arith.constant 0 : index
    %2 = vector.load %arg2[%c0_1, %c0_2] : memref<512x512xbf16, #tpu.memory_space<vmem>>, vector<512x512xbf16>
    %cst = arith.constant dense<0.000000e+00> : vector<64x512xf32>
    %3 = tpu.matmul %1, %2, %cst {dimension_numbers = #tpu.dot_dimension_numbers<[1], [0], [0], [1], [0, 0, 1, 1], [], []>} : vector<64x512xbf16>, vector<512x512xbf16>, vector<64x512xf32> -> vector<64x512xf32>
    %c0_3 = arith.constant 0 : index
    %c0_4 = arith.constant 0 : index
    %4 = vector.load %arg3[%c0_3, %c0_4] : memref<1x512xf32, #tpu.memory_space<vmem>>, vector<1x512xf32>
    %5 = vector.broadcast %4 : vector<1x512xf32> to vector<64x512xf32>
    %6 = arith.addf %3, %5 : vector<64x512xf32>
    %7 = vector.extract_strided_slice %6 {offsets = [0, 0], sizes = [64, 256], strides = [1, 1]} : vector<64x512xf32> to vector<64x256xf32>
    %cst_5 = arith.constant 0.000000e+00 : f32
    %8 = vector.broadcast %cst_5 : f32 to vector<64x256xf32>
    %9 = arith.maximumf %7, %8 : vector<64x256xf32>
    %10 = vector.extract_strided_slice %6 {offsets = [0, 256], sizes = [64, 256], strides = [1, 1]} : vector<64x512xf32> to vector<64x256xf32>
    %cst_6 = arith.constant 0.000000e+00 : f32
    %11 = vector.broadcast %cst_6 : f32 to vector<64x256xf32>
    %12 = arith.maximumf %10, %11 : vector<64x256xf32>
    %13 = arith.truncf %9 : vector<64x256xf32> to vector<64x256xbf16>
    %c0_7 = arith.constant 0 : index
    %c0_8 = arith.constant 0 : index
    %14 = vector.load %arg4[%c0_7, %c0_8] : memref<256x256xbf16, #tpu.memory_space<vmem>>, vector<256x256xbf16>
    %cst_9 = arith.constant dense<0.000000e+00> : vector<64x256xf32>
    %15 = tpu.matmul %13, %14, %cst_9 {dimension_numbers = #tpu.dot_dimension_numbers<[1], [0], [0], [1], [0, 0, 1, 1], [], []>} : vector<64x256xbf16>, vector<256x256xbf16>, vector<64x256xf32> -> vector<64x256xf32>
    %c0_10 = arith.constant 0 : index
    %c0_11 = arith.constant 0 : index
    %16 = vector.load %arg5[%c0_10, %c0_11] : memref<1x256xf32, #tpu.memory_space<vmem>>, vector<1x256xf32>
    %17 = vector.broadcast %16 : vector<1x256xf32> to vector<64x256xf32>
    %18 = arith.addf %15, %17 : vector<64x256xf32>
    %19 = arith.addf %12, %18 : vector<64x256xf32>
    %cst_12 = arith.constant 0.000000e+00 : f32
    %20 = vector.broadcast %cst_12 : f32 to vector<64x256xf32>
    %21 = arith.maximumf %19, %20 : vector<64x256xf32>
    %c0_13 = arith.constant 0 : index
    %c0_14 = arith.constant 0 : index
    %22 = vector.load %arg6[%c0_13, %c0_14] : memref<64x256xf32, #tpu.memory_space<vmem>>, vector<64x256xf32>
    tpu.vector_store %arg6[%c0_13, %c0_14], %21 {strides = array<i32>} : memref<64x256xf32, #tpu.memory_space<vmem>>, vector<64x256xf32>,
    return
  }
  func.func @transform_0(%arg0: i32) -> (i32, i32) {
    %c0_i32 = arith.constant 0 : i32
    %c0_i32_0 = arith.constant 0 : i32
    return %arg0, %c0_i32 : i32, i32
  }
  func.func @transform_1(%arg0: i32) -> (i32, i32) {
    %c0_i32 = arith.constant 0 : i32
    %c0_i32_0 = arith.constant 0 : i32
    %c0_i32_1 = arith.constant 0 : i32
    return %c0_i32, %c0_i32_0 : i32, i32
  }
  func.func @transform_2(%arg0: i32) -> (i32, i32) {
    %c0_i32 = arith.constant 0 : i32
    %c0_i32_0 = arith.constant 0 : i32
    %c0_i32_1 = arith.constant 0 : i32
    return %c0_i32, %c0_i32_0 : i32, i32
  }
  func.func @transform_3(%arg0: i32) -> (i32, i32) {
    %c0_i32 = arith.constant 0 : i32
    %c0_i32_0 = arith.constant 0 : i32
    %c0_i32_1 = arith.constant 0 : i32
    return %c0_i32, %c0_i32_0 : i32, i32
  }
  func.func @transform_4(%arg0: i32) -> (i32, i32) {
    %c0_i32 = arith.constant 0 : i32
    %c0_i32_0 = arith.constant 0 : i32
    %c0_i32_1 = arith.constant 0 : i32
    return %c0_i32, %c0_i32_0 : i32, i32
  }
  func.func @transform_5(%arg0: i32) -> (i32, i32) {
    %c0_i32 = arith.constant 0 : i32
    %c0_i32_0 = arith.constant 0 : i32
    return %arg0, %c0_i32 : i32, i32
  }
}

</mosaic_0001>

<llo_original>
// kernel: tpu_custom_call.1
$region0: #{tpu_custom_call.1}
  #allocation0 [shape = 'u32[]', space=smem, size = 0x4, offset = 0x4, fixed_abs, tag = 'smem constant byte address 0x4 - core index']
  #allocation1 [shape = 'u32[144,128]{1,0:T(1,128)}', space=vmem, size = 0x12000, scoped, tag = 'internal scratch']
  %s0 = inlined_call_operand.hbm [shape: f32[128,512], index: 0, kind: input, shape index: {}]
  %s1 = inlined_call_operand.hbm [shape: bf16[512,512], index: 1, kind: input, shape index: {}]
  %s2 = inlined_call_operand.vmem [shape: f32[1,512], index: 2, kind: input, shape index: {}]
  %s3 = inlined_call_operand.hbm [shape: bf16[256,256], index: 3, kind: input, shape index: {}]
  %s4 = inlined_call_operand.vmem [shape: f32[1,256], index: 4, kind: input, shape index: {}]
  %s5 = inlined_call_operand.hbm [shape: f32[128,256], index: 5, kind: output, shape index: {}]
  %s6 = sld [smem:[#allocation0]]
  $region65: #{tpu_custom_call.1} parent=0
    _
  %s8 = ssub.s32 1, %s6
  %s9 = scalar_select 0, %s8, %s6
  $region1: #{tpu_custom_call.1} parent=0
    #allocation2 [shape = 'u8[262144]{0}', space=vmem, size = 0x40000, scoped, tag = 'input window, operand 0']
    #allocation3 [shape = 's32[2]{0}', space=sflag, size = 0x8, scoped, tag = 'scoped memory for tpu_custom_call.1']
    #allocation4 [shape = 's32[2]{0}', space=sflag, size = 0x8, scoped, tag = 'scoped memory for tpu_custom_call.1']
    #allocation5 [shape = 'u8[524288]{0}', space=vmem, size = 0x80000, scoped, tag = 'input window, operand 1, single buffered']
    #allocation6 [shape = 's32[1]{0}', space=sflag, size = 0x4, scoped, tag = 'scoped memory for tpu_custom_call.1']
    #allocation7 [shape = 'u8[131072]{0}', space=vmem, size = 0x20000, scoped, tag = 'input window, operand 3, single buffered']
    #allocation8 [shape = 'u8[131072]{0}', space=vmem, size = 0x20000, scoped, tag = 'output window, operand 0']
    %10 = vsyncpa [#allocation3], 0
    %s11 = scalar_lea.sflag [#allocation3], 1
    %12 = vsyncpa %s11, 0
    %13 = vsyncpa [#allocation6], 0
    %14 = vsyncpa [#allocation4], 0
    %s15 = scalar_lea.sflag [#allocation4], 1
    %16 = vsyncpa %s15, 0
    loop: start=0, step=1, limit=4
    $region2: #{tpu_custom_call.1} parent=1 // loop_pre_header
      _
    $region3: #{tpu_custom_call.1} parent=1 // loop_header
      %s18 = sphi 0, %s22
      %p19 = scmp.ge.s32.totalorder %s18, 4
      %s28 = sphi 0, %s30
      %s31 = sphi 0, %s28
      %s32 = sphi 0, %s31
      %s48 = sphi 0, %s32
      %s52 = sphi 0, %s52
      %s54 = sphi 0, %s52
      %s55 = sphi 0, %s54
      %s69 = sphi 0, %s55
      %s73 = sphi 0, %s73
      %s75 = sphi 0, %s73
      %s76 = sphi 0, %s75
      %s90 = sphi 0, %s76
      %s94 = sphi 0, %s94
      %s96 = sphi 0, %s94
      %s97 = sphi 0, %s96
      %s111 = sphi 0, %s97
      %s115 = sphi 0, %s115
      %s117 = sphi 0, %s115
      %s118 = sphi 0, %s117
      %s132 = sphi 0, %s118
      %s138 = sphi 0, %s140
      %s141 = sphi 0, %s138
      %s142 = sphi 0, %s141
      %s158 = sphi 0, %s142
    $region4: #{tpu_custom_call.1} parent=1 // loop_header_branch
      %21 = sbr.rel (%p19) target = $region8
    $region5: #{tpu_custom_call.1} parent=1 // loop_body
      %s23 = ssub.s32 %s18, 1
      %s24 = ssub.s32 %s18, 2
      %s25 = sadd.s32 %s18, 1
      %s26 = ssub.s32 %s18, %s25
      %p27 = scmp.eq.s32.totalorder %s26, 0
      %s29 = sadd.s32 %s28, 1
      %s30 = scalar_select %p27, %s28, %s29
      %p33 = pneg %p27
      %p34 = scmp.eq.s32.totalorder %s18, 1
      %p35 = por %p33, %p34
      %p36 = scmp.ne.s32.totalorder %s28, %s31
      %p37 = scmp.eq.s32.totalorder %s18, 0
      %p38 = por %p36, %p37
      %p39 = scmp.ne.s32.totalorder %s28, %s31
      %p40 = scmp.eq.s32.totalorder %s23, 1
      %p41 = por %p39, %p40
      %p42 = scmp.ne.s32.totalorder %s31, %s32
      %p43 = scmp.eq.s32.totalorder %s23, 0
      %p44 = por %p42, %p43
      %p45 = scmp.ne.s32.totalorder %s31, %s32
      %p46 = scmp.eq.s32.totalorder %s24, 1
      %p47 = por %p45, %p46
      %p49 = scmp.ne.s32.totalorder %s32, %s48
      %p50 = scmp.eq.s32.totalorder %s24, 0
      %p51 = por %p49, %p50
      %s53 = sadd.s32 %s52, 1
      %p56 = scmp.eq.s32.totalorder %s18, 1
      %p57 = scmp.ne.s32.totalorder %s52, %s54
      %p58 = scmp.eq.s32.totalorder %s18, 0
      %p59 = por %p57, %p58
      %p60 = scmp.ne.s32.totalorder %s52, %s54
      %p61 = scmp.eq.s32.totalorder %s23, 1
      %p62 = por %p60, %p61
      %p63 = scmp.ne.s32.totalorder %s54, %s55
      %p64 = scmp.eq.s32.totalorder %s23, 0
      %p65 = por %p63, %p64
      %p66 = scmp.ne.s32.totalorder %s54, %s55
      %p67 = scmp.eq.s32.totalorder %s24, 1
      %p68 = por %p66, %p67
      %p70 = scmp.ne.s32.totalorder %s55, %s69
      %p71 = scmp.eq.s32.totalorder %s24, 0
      %p72 = por %p70, %p71
      %s74 = sadd.s32 %s73, 1
      %p77 = scmp.eq.s32.totalorder %s18, 1
      %p78 = scmp.ne.s32.totalorder %s73, %s75
      %p79 = scmp.eq.s32.totalorder %s18, 0
      %p80 = por %p78, %p79
      %p81 = scmp.ne.s32.totalorder %s73, %s75
      %p82 = scmp.eq.s32.totalorder %s23, 1
      %p83 = por %p81, %p82
      %p84 = scmp.ne.s32.totalorder %s75, %s76
      %p85 = scmp.eq.s32.totalorder %s23, 0
      %p86 = por %p84, %p85
      %p87 = scmp.ne.s32.totalorder %s75, %s76
      %p88 = scmp.eq.s32.totalorder %s24, 1
      %p89 = por %p87, %p88
      %p91 = scmp.ne.s32.totalorder %s76, %s90
      %p92 = scmp.eq.s32.totalorder %s24, 0
      %p93 = por %p91, %p92
      %s95 = sadd.s32 %s94, 1
      %p98 = scmp.eq.s32.totalorder %s18, 1
      %p99 = scmp.ne.s32.totalorder %s94, %s96
      %p100 = scmp.eq.s32.totalorder %s18, 0
      %p101 = por %p99, %p100
      %p102 = scmp.ne.s32.totalorder %s94, %s96
      %p103 = scmp.eq.s32.totalorder %s23, 1
      %p104 = por %p102, %p103
      %p105 = scmp.ne.s32.totalorder %s96, %s97
      %p106 = scmp.eq.s32.totalorder %s23, 0
      %p107 = por %p105, %p106
      %p108 = scmp.ne.s32.totalorder %s96, %s97
      %p109 = scmp.eq.s32.totalorder %s24, 1
      %p110 = por %p108, %p109
      %p112 = scmp.ne.s32.totalorder %s97, %s111
      %p113 = scmp.eq.s32.totalorder %s24, 0
      %p114 = por %p112, %p113
      %s116 = sadd.s32 %s115, 1
      %p119 = scmp.eq.s32.totalorder %s18, 1
      %p120 = scmp.ne.s32.totalorder %s115, %s117
      %p121 = scmp.eq.s32.totalorder %s18, 0
      %p122 = por %p120, %p121
      %p123 = scmp.ne.s32.totalorder %s115, %s117
      %p124 = scmp.eq.s32.totalorder %s23, 1
      %p125 = por %p123, %p124
      %p126 = scmp.ne.s32.totalorder %s117, %s118
      %p127 = scmp.eq.s32.totalorder %s23, 0
      %p128 = por %p126, %p127
      %p129 = scmp.ne.s32.totalorder %s117, %s118
      %p130 = scmp.eq.s32.totalorder %s24, 1
      %p131 = por %p129, %p130
      %p133 = scmp.ne.s32.totalorder %s118, %s132
      %p134 = scmp.eq.s32.totalorder %s24, 0
      %p135 = por %p133, %p134
      %s136 = ssub.s32 %s18, %s25
      %p137 = scmp.eq.s32.totalorder %s136, 0
      %s139 = sadd.s32 %s138, 1
      %s140 = scalar_select %p137, %s138, %s139
      %p143 = pneg %p137
      %p144 = scmp.eq.s32.totalorder %s18, 1
      %p145 = por %p143, %p144
      %p146 = scmp.ne.s32.totalorder %s138, %s141
      %p147 = scmp.eq.s32.totalorder %s18, 0
      %p148 = por %p146, %p147
      %p149 = scmp.ne.s32.totalorder %s138, %s141
      %p150 = scmp.eq.s32.totalorder %s23, 1
      %p151 = por %p149, %p150
      %p152 = scmp.ne.s32.totalorder %s141, %s142
      %p153 = scmp.eq.s32.totalorder %s23, 0
      %p154 = por %p152, %p153
      %p155 = scmp.ne.s32.totalorder %s141, %s142
      %p156 = scmp.eq.s32.totalorder %s24, 1
      %p157 = por %p155, %p156
      %p159 = scmp.ne.s32.totalorder %s142, %s158
      %p160 = scmp.eq.s32.totalorder %s24, 0
      %p161 = por %p159, %p160
      %p162 = scmp.le.s32.totalorder 1, %s18
      %p163 = scmp.lt.s32.totalorder %s18, 3
      %p164 = pnand %p162, %p163
      %p165 = pneg %p164
      // Predicated region
      $region9: #{tpu_custom_call.1} parent=5 // pred_check
        _
      $region10: #{tpu_custom_call.1} parent=5 // pred_check_branch
        %167 = sbr.rel (%p164) target = $region12
      $region11: #{tpu_custom_call.1} parent=5 // pred_region
        %s168 = ssub.s32 %s18, 1
        // Predicated region
        $region13: #{tpu_custom_call.1} parent=11 // pred_check
          %p169 = pneg %p65
        $region14: #{tpu_custom_call.1} parent=11 // pred_check_branch
          %171 = sbr.rel (%p169) target = $region16
        $region15: #{tpu_custom_call.1} parent=11 // pred_region
          %s173 = ssub.s32 16384, 16384
          %174 = vsyncadd [#allocation6], %s173
          %s175 = sshll.u32 [#allocation5], 4
          %s176 = int_to_ptr.vmem [resolvable:$true] %s175
          %181 = dma.hbm_to_vmem [thread:$0]  %s1, 16384, %s176, [#allocation6], 256, 256, 16
        $region16: #{tpu_custom_call.1} parent=11 // pred_fallthru
          _
        // Predicated region
        $region17: #{tpu_custom_call.1} parent=11 // pred_check
          %p182 = pneg %p86
        $region18: #{tpu_custom_call.1} parent=11 // pred_check_branch
          %184 = sbr.rel (%p182) target = $region20
        $region19: #{tpu_custom_call.1} parent=11 // pred_region
          _
        $region20: #{tpu_custom_call.1} parent=11 // pred_fallthru
          _
        // Predicated region
        $region21: #{tpu_custom_call.1} parent=11 // pred_check
          %p185 = pneg %p107
        $region22: #{tpu_custom_call.1} parent=11 // pred_check_branch
          %187 = sbr.rel (%p185) target = $region24
        $region23: #{tpu_custom_call.1} parent=11 // pred_region
          %s189 = ssub.s32 4096, 4096
          %190 = vsyncadd [#allocation6], %s189
          %s191 = sshll.u32 [#allocation7], 4
          %s192 = int_to_ptr.vmem [resolvable:$true] %s191
          %197 = dma.hbm_to_vmem [thread:$0]  %s3, 4096, %s192, [#allocation6], 128, 128, 8
        $region24: #{tpu_custom_call.1} parent=11 // pred_fallthru
          _
        // Predicated region
        $region25: #{tpu_custom_call.1} parent=11 // pred_check
          %p198 = pneg %p128
        $region26: #{tpu_custom_call.1} parent=11 // pred_check_branch
          %200 = sbr.rel (%p198) target = $region28
        $region27: #{tpu_custom_call.1} parent=11 // pred_region
          _
        $region28: #{tpu_custom_call.1} parent=11 // pred_fallthru
          _
      $region12: #{tpu_custom_call.1} parent=5 // pred_fallthru
        _
      %p201 = scmp.lt.s32.totalorder %s18, 2
      // Predicated region
      $region29: #{tpu_custom_call.1} parent=5 // pred_check
        %p202 = pneg %p201
      $region30: #{tpu_custom_call.1} parent=5 // pred_check_branch
        %204 = sbr.rel (%p202) target = $region32
      $region31: #{tpu_custom_call.1} parent=5 // pred_region
        // Predicated region
        $region33: #{tpu_custom_call.1} parent=31 // pred_check
          %p205 = pneg %p38
        $region34: #{tpu_custom_call.1} parent=31 // pred_check_branch
          %207 = sbr.rel (%p205) target = $region36
        $region35: #{tpu_custom_call.1} parent=31 // pred_region
          %s208 = sand.u32 %s28, 1
          %s209 = scalar_lea.sflag [#allocation3], %s208
          %s210 = sand.u32 %s28, 1
          %s211 = smul.addr %s210, 256
          %s212 = scalar_lea.vmem [#allocation2], %s211
          %s213 = smul.u32 8, %s18
          %s215 = ssub.s32 4096, 4096
          %216 = vsyncadd %s209, %s215
          %s217 = smul.addr %s213, 4
          %s218 = smul.addr %s217, 128
          %s219 = scalar_lea.hbm %s0, %s218
          %s220 = sshll.u32 %s212, 4
          %s221 = int_to_ptr.vmem [resolvable:$true] %s220
          %226 = dma.hbm_to_vmem [thread:$0]  %s219, 4096, %s221, %s209, 512, 512, 32
        $region36: #{tpu_custom_call.1} parent=31 // pred_fallthru
          _
      $region32: #{tpu_custom_call.1} parent=5 // pred_fallthru
        _
      %p227 = scmp.le.s32.totalorder 1, %s18
      %p228 = scmp.lt.s32.totalorder %s18, 3
      %p229 = pnand %p227, %p228
      %p230 = pneg %p229
      // Predicated region
      $region37: #{tpu_custom_call.1} parent=5 // pred_check
        _
      $region38: #{tpu_custom_call.1} parent=5 // pred_check_branch
        %232 = sbr.rel (%p229) target = $region40
      $region39: #{tpu_custom_call.1} parent=5 // pred_region
        %s233 = ssub.s32 %s18, 1
        %s234 = sand.u32 %s31, 1
        %s235 = scalar_lea.sflag [#allocation3], %s234
        %s236 = sand.u32 %s31, 1
        %s237 = smul.addr %s236, 256
        %s238 = scalar_lea.vmem [#allocation2], %s237
        // Predicated region
        $region41: #{tpu_custom_call.1} parent=39 // pred_check
          %p239 = pneg %p44
        $region42: #{tpu_custom_call.1} parent=39 // pred_check_branch
          %241 = sbr.rel (%p239) target = $region44
        $region43: #{tpu_custom_call.1} parent=39 // pred_region
          %242 = dma.done %s235, 4096
        $region44: #{tpu_custom_call.1} parent=39 // pred_fallthru
          _
        // Predicated region
        $region45: #{tpu_custom_call.1} parent=39 // pred_check
          %p243 = pneg %p65
        $region46: #{tpu_custom_call.1} parent=39 // pred_check_branch
          %245 = sbr.rel (%p243) target = $region48
        $region47: #{tpu_custom_call.1} parent=39 // pred_region
          %246 = dma.done [#allocation6], 16384
        $region48: #{tpu_custom_call.1} parent=39 // pred_fallthru
          _
        // Predicated region
        $region49: #{tpu_custom_call.1} parent=39 // pred_check
          %p247 = pneg %p107
        $region50: #{tpu_custom_call.1} parent=39 // pred_check_branch
          %249 = sbr.rel (%p247) target = $region52
        $region51: #{tpu_custom_call.1} parent=39 // pred_region
          %250 = dma.done [#allocation6], 4096
        $region52: #{tpu_custom_call.1} parent=39 // pred_fallthru
          _
        %s251 = sand.u32 %s31, 1
        %s252 = scalar_lea.sflag [#allocation3], %s251
        %s253 = sand.u32 %s31, 1
        %s254 = smul.addr %s253, 256
        %s255 = scalar_lea.vmem [#allocation2], %s254
        %p256 = pneg %p44
        %p257 = pneg %p41
        %p258 = pneg %p65
        %p259 = pneg %p62
        %p260 = pneg %p86
        %p261 = pneg %p83
        %p262 = pneg %p107
        %p263 = pneg %p104
        %p264 = pneg %p128
        %p265 = pneg %p125
        %p266 = pneg %p154
        %p267 = pneg %p151
        %s268 = sand.u32 %s141, 1
        %s269 = scalar_lea.sflag [#allocation4], %s268
        %s270 = sand.u32 %s141, 1
        %s271 = smul.addr %s270, 128
        %s272 = scalar_lea.vmem [#allocation8], %s271
        %s273 = smul.u32 8, %s23
        %s274 = smul.u32 8, %s23
        %v275 = vld [vmem:[%s238] sm:$0xff]
        %v276 = vld [vmem:[%s238 + $0x8] sm:$0xff]
        %v277 = vld [vmem:[%s238 + $0x10] sm:$0xff]
        %v278 = vld [vmem:[%s238 + $0x18] sm:$0xff]
        %v279 = vld [vmem:[%s238 + $0x20] sm:$0xff]
        %v280 = vld [vmem:[%s238 + $0x28] sm:$0xff]
        %v281 = vld [vmem:[%s238 + $0x30] sm:$0xff]
        %v282 = vld [vmem:[%s238 + $0x38] sm:$0xff]
        %v283 = vld [vmem:[%s238 + $0x40] sm:$0xff]
        %v284 = vld [vmem:[%s238 + $0x48] sm:$0xff]
        %v285 = vld [vmem:[%s238 + $0x50] sm:$0xff]
        %v286 = vld [vmem:[%s238 + $0x58] sm:$0xff]
        %v287 = vld [vmem:[%s238 + $0x60] sm:$0xff]
        %v288 = vld [vmem:[%s238 + $0x68] sm:$0xff]
        %v289 = vld [vmem:[%s238 + $0x70] sm:$0xff]
        %v290 = vld [vmem:[%s238 + $0x78] sm:$0xff]
        %v291 = vld [vmem:[%s238 + $0x80] sm:$0xff]
        %v292 = vld [vmem:[%s238 + $0x88] sm:$0xff]
        %v293 = vld [vmem:[%s238 + $0x90] sm:$0xff]
        %v294 = vld [vmem:[%s238 + $0x98] sm:$0xff]
        %v295 = vld [vmem:[%s238 + $0xa0] sm:$0xff]
        %v296 = vld [vmem:[%s238 + $0xa8] sm:$0xff]
        %v297 = vld [vmem:[%s238 + $0xb0] sm:$0xff]
        %v298 = vld [vmem:[%s238 + $0xb8] sm:$0xff]
        %v299 = vld [vmem:[%s238 + $0xc0] sm:$0xff]
        %v300 = vld [vmem:[%s238 + $0xc8] sm:$0xff]
        %v301 = vld [vmem:[%s238 + $0xd0] sm:$0xff]
        %v302 = vld [vmem:[%s238 + $0xd8] sm:$0xff]
        %v303 = vld [vmem:[%s238 + $0xe0] sm:$0xff]
        %v304 = vld [vmem:[%s238 + $0xe8] sm:$0xff]
        %v305 = vld [vmem:[%s238 + $0xf0] sm:$0xff]
        %v306 = vld [vmem:[%s238 + $0xf8] sm:$0xff]
        %v307 = vpack.c.bf16 %v279, %v275
        %v308 = vpack.c.bf16 %v280, %v276
        %v309 = vpack.c.bf16 %v281, %v277
        %v310 = vpack.c.bf16 %v282, %v278
        %v311 = vpack.c.bf16 %v287, %v283
        %v312 = vpack.c.bf16 %v288, %v284
        %v313 = vpack.c.bf16 %v289, %v285
        %v314 = vpack.c.bf16 %v290, %v286
        %v315 = vpack.c.bf16 %v295, %v291
        %v316 = vpack.c.bf16 %v296, %v292
        %v317 = vpack.c.bf16 %v297, %v293
        %v318 = vpack.c.bf16 %v298, %v294
        %v319 = vpack.c.bf16 %v303, %v299
        %v320 = vpack.c.bf16 %v304, %v300
        %v321 = vpack.c.bf16 %v305, %v301
        %v322 = vpack.c.bf16 %v306, %v302
        %v323 = vld [vmem:[#allocation5] sm:$0xff]
        %v324 = vld [vmem:[#allocation5 + $0x8] sm:$0xff]
        %v325 = vld [vmem:[#allocation5 + $0x10] sm:$0xff]
        %v326 = vld [vmem:[#allocation5 + $0x18] sm:$0xff]
        %v327 = vld [vmem:[#allocation5 + $0x20] sm:$0xff]
        %v328 = vld [vmem:[#allocation5 + $0x28] sm:$0xff]
        %v329 = vld [vmem:[#allocation5 + $0x30] sm:$0xff]
        %v330 = vld [vmem:[#allocation5 + $0x38] sm:$0xff]
        %v331 = vld [vmem:[#allocation5 + $0x40] sm:$0xff]
        %v332 = vld [vmem:[#allocation5 + $0x48] sm:$0xff]
        %v333 = vld [vmem:[#allocation5 + $0x50] sm:$0xff]
        %v334 = vld [vmem:[#allocation5 + $0x58] sm:$0xff]
        %v335 = vld [vmem:[#allocation5 + $0x60] sm:$0xff]
        %v336 = vld [vmem:[#allocation5 + $0x68] sm:$0xff]
        %v337 = vld [vmem:[#allocation5 + $0x70] sm:$0xff]
        %v338 = vld [vmem:[#allocation5 + $0x78] sm:$0xff]
        %v339 = vld [vmem:[#allocation5 + $0x80] sm:$0xff]
        %v340 = vld [vmem:[#allocation5 + $0x88] sm:$0xff]
        %v341 = vld [vmem:[#allocation5 + $0x90] sm:$0xff]
        %v342 = vld [vmem:[#allocation5 + $0x98] sm:$0xff]
        %v343 = vld [vmem:[#allocation5 + $0xa0] sm:$0xff]
        %v344 = vld [vmem:[#allocation5 + $0xa8] sm:$0xff]
        %v345 = vld [vmem:[#allocation5 + $0xb0] sm:$0xff]
        %v346 = vld [vmem:[#allocation5 + $0xb8] sm:$0xff]
        %v347 = vld [vmem:[#allocation5 + $0xc0] sm:$0xff]
        %v348 = vld [vmem:[#allocation5 + $0xc8] sm:$0xff]
        %v349 = vld [vmem:[#allocation5 + $0xd0] sm:$0xff]
        %v350 = vld [vmem:[#allocation5 + $0xd8] sm:$0xff]
        %v351 = vld [vmem:[#allocation5 + $0xe0] sm:$0xff]
        %v352 = vld [vmem:[#allocation5 + $0xe8] sm:$0xff]
        %v353 = vld [vmem:[#allocation5 + $0xf0] sm:$0xff]
        %v354 = vld [vmem:[#allocation5 + $0xf8] sm:$0xff]
        %v355 = vld [vmem:[#allocation5 + $0x100] sm:$0xff]
        %v356 = vld [vmem:[#allocation5 + $0x108] sm:$0xff]
        %v357 = vld [vmem:[#allocation5 + $0x110] sm:$0xff]
        %v358 = vld [vmem:[#allocation5 + $0x118] sm:$0xff]
        %v359 = vld [vmem:[#allocation5 + $0x120] sm:$0xff]
        %v360 = vld [vmem:[#allocation5 + $0x128] sm:$0xff]
        %v361 = vld [vmem:[#allocation5 + $0x130] sm:$0xff]
        %v362 = vld [vmem:[#allocation5 + $0x138] sm:$0xff]
        %v363 = vld [vmem:[#allocation5 + $0x140] sm:$0xff]
        %v364 = vld [vmem:[#allocation5 + $0x148] sm:$0xff]
        %v365 = vld [vmem:[#allocation5 + $0x150] sm:$0xff]
        %v366 = vld [vmem:[#allocation5 + $0x158] sm:$0xff]
        %v367 = vld [vmem:[#allocation5 + $0x160] sm:$0xff]
        %v368 = vld [vmem:[#allocation5 + $0x168] sm:$0xff]
        %v369 = vld [vmem:[#allocation5 + $0x170] sm:$0xff]
        %v370 = vld [vmem:[#allocation5 + $0x178] sm:$0xff]
        %v371 = vld [vmem:[#allocation5 + $0x180] sm:$0xff]
        %v372 = vld [vmem:[#allocation5 + $0x188] sm:$0xff]
        %v373 = vld [vmem:[#allocation5 + $0x190] sm:$0xff]
        %v374 = vld [vmem:[#allocation5 + $0x198] sm:$0xff]
        %v375 = vld [vmem:[#allocation5 + $0x1a0] sm:$0xff]
        %v376 = vld [vmem:[#allocation5 + $0x1a8] sm:$0xff]
        %v377 = vld [vmem:[#allocation5 + $0x1b0] sm:$0xff]
        %v378 = vld [vmem:[#allocation5 + $0x1b8] sm:$0xff]
        %v379 = vld [vmem:[#allocation5 + $0x1c0] sm:$0xff]
        %v380 = vld [vmem:[#allocation5 + $0x1c8] sm:$0xff]
        %v381 = vld [vmem:[#allocation5 + $0x1d0] sm:$0xff]
        %v382 = vld [vmem:[#allocation5 + $0x1d8] sm:$0xff]
        %v383 = vld [vmem:[#allocation5 + $0x1e0] sm:$0xff]
        %v384 = vld [vmem:[#allocation5 + $0x1e8] sm:$0xff]
        %v385 = vld [vmem:[#allocation5 + $0x1f0] sm:$0xff]
        %v386 = vld [vmem:[#allocation5 + $0x1f8] sm:$0xff]
        %v387 = vld [vmem:[#allocation5 + $0x200] sm:$0xff]
        %v388 = vld [vmem:[#allocation5 + $0x208] sm:$0xff]
        %v389 = vld [vmem:[#allocation5 + $0x210] sm:$0xff]
        %v390 = vld [vmem:[#allocation5 + $0x218] sm:$0xff]
        %v391 = vld [vmem:[#allocation5 + $0x220] sm:$0xff]
        %v392 = vld [vmem:[#allocation5 + $0x228] sm:$0xff]
        %v393 = vld [vmem:[#allocation5 + $0x230] sm:$0xff]
        %v394 = vld [vmem:[#allocation5 + $0x238] sm:$0xff]
        %v395 = vld [vmem:[#allocation5 + $0x240] sm:$0xff]
        %v396 = vld [vmem:[#allocation5 + $0x248] sm:$0xff]
        %v397 = vld [vmem:[#allocation5 + $0x250] sm:$0xff]
        %v398 = vld [vmem:[#allocation5 + $0x258] sm:$0xff]
        %v399 = vld [vmem:[#allocation5 + $0x260] sm:$0xff]
        %v400 = vld [vmem:[#allocation5 + $0x268] sm:$0xff]
        %v401 = vld [vmem:[#allocation5 + $0x270] sm:$0xff]
        %v402 = vld [vmem:[#allocation5 + $0x278] sm:$0xff]
        %v403 = vld [vmem:[#allocation5 + $0x280] sm:$0xff]
        %v404 = vld [vmem:[#allocation5 + $0x288] sm:$0xff]
        %v405 = vld [vmem:[#allocation5 + $0x290] sm:$0xff]
        %v406 = vld [vmem:[#allocation5 + $0x298] sm:$0xff]
        %v407 = vld [vmem:[#allocation5 + $0x2a0] sm:$0xff]
        %v408 = vld [vmem:[#allocation5 + $0x2a8] sm:$0xff]
        %v409 = vld [vmem:[#allocation5 + $0x2b0] sm:$0xff]
        %v410 = vld [vmem:[#allocation5 + $0x2b8] sm:$0xff]
        %v411 = vld [vmem:[#allocation5 + $0x2c0] sm:$0xff]
        %v412 = vld [vmem:[#allocation5 + $0x2c8] sm:$0xff]
        %v413 = vld [vmem:[#allocation5 + $0x2d0] sm:$0xff]
        %v414 = vld [vmem:[#allocation5 + $0x2d8] sm:$0xff]
        %v415 = vld [vmem:[#allocation5 + $0x2e0] sm:$0xff]
        %v416 = vld [vmem:[#allocation5 + $0x2e8] sm:$0xff]
        %v417 = vld [vmem:[#allocation5 + $0x2f0] sm:$0xff]
        %v418 = vld [vmem:[#allocation5 + $0x2f8] sm:$0xff]
        %v419 = vld [vmem:[#allocation5 + $0x300] sm:$0xff]
        %v420 = vld [vmem:[#allocation5 + $0x308] sm:$0xff]
        %v421 = vld [vmem:[#allocation5 + $0x310] sm:$0xff]
        %v422 = vld [vmem:[#allocation5 + $0x318] sm:$0xff]
        %v423 = vld [vmem:[#allocation5 + $0x320] sm:$0xff]
        %v424 = vld [vmem:[#allocation5 + $0x328] sm:$0xff]
        %v425 = vld [vmem:[#allocation5 + $0x330] sm:$0xff]
        %v426 = vld [vmem:[#allocation5 + $0x338] sm:$0xff]
        %v427 = vld [vmem:[#allocation5 + $0x340] sm:$0xff]
        %v428 = vld [vmem:[#allocation5 + $0x348] sm:$0xff]
        %v429 = vld [vmem:[#allocation5 + $0x350] sm:$0xff]
        %v430 = vld [vmem:[#allocation5 + $0x358] sm:$0xff]
        %v431 = vld [vmem:[#allocation5 + $0x360] sm:$0xff]
        %v432 = vld [vmem:[#allocation5 + $0x368] sm:$0xff]
        %v433 = vld [vmem:[#allocation5 + $0x370] sm:$0xff]
        %v434 = vld [vmem:[#allocation5 + $0x378] sm:$0xff]
        %v435 = vld [vmem:[#allocation5 + $0x380] sm:$0xff]
        %v436 = vld [vmem:[#allocation5 + $0x388] sm:$0xff]
        %v437 = vld [vmem:[#allocation5 + $0x390] sm:$0xff]
        %v438 = vld [vmem:[#allocation5 + $0x398] sm:$0xff]
        %v439 = vld [vmem:[#allocation5 + $0x3a0] sm:$0xff]
        %v440 = vld [vmem:[#allocation5 + $0x3a8] sm:$0xff]
        %v441 = vld [vmem:[#allocation5 + $0x3b0] sm:$0xff]
        %v442 = vld [vmem:[#allocation5 + $0x3b8] sm:$0xff]
        %v443 = vld [vmem:[#allocation5 + $0x3c0] sm:$0xff]
        %v444 = vld [vmem:[#allocation5 + $0x3c8] sm:$0xff]
        %v445 = vld [vmem:[#allocation5 + $0x3d0] sm:$0xff]
        %v446 = vld [vmem:[#allocation5 + $0x3d8] sm:$0xff]
        %v447 = vld [vmem:[#allocation5 + $0x3e0] sm:$0xff]
        %v448 = vld [vmem:[#allocation5 + $0x3e8] sm:$0xff]
        %v449 = vld [vmem:[#allocation5 + $0x3f0] sm:$0xff]
        %v450 = vld [vmem:[#allocation5 + $0x3f8] sm:$0xff]
        %v451 = vld [vmem:[%s2] sm:$0xf]
        %v453 = vlaneseq
        %v454 = vshrl.u32 %v453, 7
        %v455 = vsub.s32 0, %v454
        %v456 = vrot.slane %v451, %v455
        %v457 = vlaneseq
        %v458 = vshrl.u32 %v457, 7
        %v459 = vsub.s32 1, %v458
        %v460 = vrot.slane %v451, %v459
        %v461 = vlaneseq
        %v462 = vshrl.u32 %v461, 7
        %v463 = vsub.s32 2, %v462
        %v464 = vrot.slane %v451, %v463
        %v465 = vlaneseq
        %v466 = vshrl.u32 %v465, 7
        %v467 = vsub.s32 3, %v466
        %v468 = vrot.slane %v451, %v467
        %v601 = vunpack.c.l.b16 %v323
        %v602 = vunpack.c.h.b16 %v323
        %v603 = vunpack.c.l.b16 %v324
        %v604 = vunpack.c.h.b16 %v324
        %v605 = vunpack.c.l.b16 %v325
        %v606 = vunpack.c.h.b16 %v325
        %v607 = vunpack.c.l.b16 %v326
        %v608 = vunpack.c.h.b16 %v326
        %v609 = vunpack.c.l.b16 %v327
        %v610 = vunpack.c.h.b16 %v327
        %v611 = vunpack.c.l.b16 %v328
        %v612 = vunpack.c.h.b16 %v328
        %v613 = vunpack.c.l.b16 %v329
        %v614 = vunpack.c.h.b16 %v329
        %v615 = vunpack.c.l.b16 %v330
        %v616 = vunpack.c.h.b16 %v330
        %v617 = vunpack.c.l.b16 %v331
        %v618 = vunpack.c.h.b16 %v331
        %v619 = vunpack.c.l.b16 %v332
        %v620 = vunpack.c.h.b16 %v332
        %v621 = vunpack.c.l.b16 %v333
        %v622 = vunpack.c.h.b16 %v333
        %v623 = vunpack.c.l.b16 %v334
        %v624 = vunpack.c.h.b16 %v334
        %v625 = vunpack.c.l.b16 %v335
        %v626 = vunpack.c.h.b16 %v335
        %v627 = vunpack.c.l.b16 %v336
        %v628 = vunpack.c.h.b16 %v336
        %v629 = vunpack.c.l.b16 %v337
        %v630 = vunpack.c.h.b16 %v337
        %v631 = vunpack.c.l.b16 %v338
        %v632 = vunpack.c.h.b16 %v338
        %v633 = vunpack.c.l.b16 %v339
        %v634 = vunpack.c.h.b16 %v339
        %v635 = vunpack.c.l.b16 %v340
        %v636 = vunpack.c.h.b16 %v340
        %v637 = vunpack.c.l.b16 %v341
        %v638 = vunpack.c.h.b16 %v341
        %v639 = vunpack.c.l.b16 %v342
        %v640 = vunpack.c.h.b16 %v342
        %v641 = vunpack.c.l.b16 %v343
        %v642 = vunpack.c.h.b16 %v343
        %v643 = vunpack.c.l.b16 %v344
        %v644 = vunpack.c.h.b16 %v344
        %v645 = vunpack.c.l.b16 %v345
        %v646 = vunpack.c.h.b16 %v345
        %v647 = vunpack.c.l.b16 %v346
        %v648 = vunpack.c.h.b16 %v346
        %v649 = vunpack.c.l.b16 %v347
        %v650 = vunpack.c.h.b16 %v347
        %v651 = vunpack.c.l.b16 %v348
        %v652 = vunpack.c.h.b16 %v348
        %v653 = vunpack.c.l.b16 %v349
        %v654 = vunpack.c.h.b16 %v349
        %v655 = vunpack.c.l.b16 %v350
        %v656 = vunpack.c.h.b16 %v350
        %v657 = vunpack.c.l.b16 %v351
        %v658 = vunpack.c.h.b16 %v351
        %v659 = vunpack.c.l.b16 %v352
        %v660 = vunpack.c.h.b16 %v352
        %v661 = vunpack.c.l.b16 %v353
        %v662 = vunpack.c.h.b16 %v353
        %v663 = vunpack.c.l.b16 %v354
        %v664 = vunpack.c.h.b16 %v354
        %v665 = vunpack.c.l.b16 %v355
        %v666 = vunpack.c.h.b16 %v355
        %v667 = vunpack.c.l.b16 %v356
        %v668 = vunpack.c.h.b16 %v356
        %v669 = vunpack.c.l.b16 %v357
        %v670 = vunpack.c.h.b16 %v357
        %v671 = vunpack.c.l.b16 %v358
        %v672 = vunpack.c.h.b16 %v358
        %v673 = vunpack.c.l.b16 %v359
        %v674 = vunpack.c.h.b16 %v359
        %v675 = vunpack.c.l.b16 %v360
        %v676 = vunpack.c.h.b16 %v360
        %v677 = vunpack.c.l.b16 %v361
        %v678 = vunpack.c.h.b16 %v361
        %v679 = vunpack.c.l.b16 %v362
        %v680 = vunpack.c.h.b16 %v362
        %v681 = vunpack.c.l.b16 %v363
        %v682 = vunpack.c.h.b16 %v363
        %v683 = vunpack.c.l.b16 %v364
        %v684 = vunpack.c.h.b16 %v364
        %v685 = vunpack.c.l.b16 %v365
        %v686 = vunpack.c.h.b16 %v365
        %v687 = vunpack.c.l.b16 %v366
        %v688 = vunpack.c.h.b16 %v366
        %v689 = vunpack.c.l.b16 %v367
        %v690 = vunpack.c.h.b16 %v367
        %v691 = vunpack.c.l.b16 %v368
        %v692 = vunpack.c.h.b16 %v368
        %v693 = vunpack.c.l.b16 %v369
        %v694 = vunpack.c.h.b16 %v369
        %v695 = vunpack.c.l.b16 %v370
        %v696 = vunpack.c.h.b16 %v370
        %v697 = vunpack.c.l.b16 %v371
        %v698 = vunpack.c.h.b16 %v371
        %v699 = vunpack.c.l.b16 %v372
        %v700 = vunpack.c.h.b16 %v372
        %v701 = vunpack.c.l.b16 %v373
        %v702 = vunpack.c.h.b16 %v373
        %v703 = vunpack.c.l.b16 %v374
        %v704 = vunpack.c.h.b16 %v374
        %v705 = vunpack.c.l.b16 %v375
        %v706 = vunpack.c.h.b16 %v375
        %v707 = vunpack.c.l.b16 %v376
        %v708 = vunpack.c.h.b16 %v376
        %v709 = vunpack.c.l.b16 %v377
        %v710 = vunpack.c.h.b16 %v377
        %v711 = vunpack.c.l.b16 %v378
        %v712 = vunpack.c.h.b16 %v378
        %v713 = vunpack.c.l.b16 %v379
        %v714 = vunpack.c.h.b16 %v379
        %v715 = vunpack.c.l.b16 %v380
        %v716 = vunpack.c.h.b16 %v380
        %v717 = vunpack.c.l.b16 %v381
        %v718 = vunpack.c.h.b16 %v381
        %v719 = vunpack.c.l.b16 %v382
        %v720 = vunpack.c.h.b16 %v382
        %v721 = vunpack.c.l.b16 %v383
        %v722 = vunpack.c.h.b16 %v383
        %v723 = vunpack.c.l.b16 %v384
        %v724 = vunpack.c.h.b16 %v384
        %v725 = vunpack.c.l.b16 %v385
        %v726 = vunpack.c.h.b16 %v385
        %v727 = vunpack.c.l.b16 %v386
        %v728 = vunpack.c.h.b16 %v386
        %v729 = vunpack.c.l.b16 %v387
        %v730 = vunpack.c.h.b16 %v387
        %v731 = vunpack.c.l.b16 %v388
        %v732 = vunpack.c.h.b16 %v388
        %v733 = vunpack.c.l.b16 %v389
        %v734 = vunpack.c.h.b16 %v389
        %v735 = vunpack.c.l.b16 %v390
        %v736 = vunpack.c.h.b16 %v390
        %v737 = vunpack.c.l.b16 %v391
        %v738 = vunpack.c.h.b16 %v391
        %v739 = vunpack.c.l.b16 %v392
        %v740 = vunpack.c.h.b16 %v392
        %v741 = vunpack.c.l.b16 %v393
        %v742 = vunpack.c.h.b16 %v393
        %v743 = vunpack.c.l.b16 %v394
        %v744 = vunpack.c.h.b16 %v394
        %v745 = vunpack.c.l.b16 %v395
        %v746 = vunpack.c.h.b16 %v395
        %v747 = vunpack.c.l.b16 %v396
        %v748 = vunpack.c.h.b16 %v396
        %v749 = vunpack.c.l.b16 %v397
        %v750 = vunpack.c.h.b16 %v397
        %v751 = vunpack.c.l.b16 %v398
        %v752 = vunpack.c.h.b16 %v398
        %v753 = vunpack.c.l.b16 %v399
        %v754 = vunpack.c.h.b16 %v399
        %v755 = vunpack.c.l.b16 %v400
        %v756 = vunpack.c.h.b16 %v400
        %v757 = vunpack.c.l.b16 %v401
        %v758 = vunpack.c.h.b16 %v401
        %v759 = vunpack.c.l.b16 %v402
        %v760 = vunpack.c.h.b16 %v402
        %v761 = vunpack.c.l.b16 %v403
        %v762 = vunpack.c.h.b16 %v403
        %v763 = vunpack.c.l.b16 %v404
        %v764 = vunpack.c.h.b16 %v404
        %v765 = vunpack.c.l.b16 %v405
        %v766 = vunpack.c.h.b16 %v405
        %v767 = vunpack.c.l.b16 %v406
        %v768 = vunpack.c.h.b16 %v406
        %v769 = vunpack.c.l.b16 %v407
        %v770 = vunpack.c.h.b16 %v407
        %v771 = vunpack.c.l.b16 %v408
        %v772 = vunpack.c.h.b16 %v408
        %v773 = vunpack.c.l.b16 %v409
        %v774 = vunpack.c.h.b16 %v409
        %v775 = vunpack.c.l.b16 %v410
        %v776 = vunpack.c.h.b16 %v410
        %v777 = vunpack.c.l.b16 %v411
        %v778 = vunpack.c.h.b16 %v411
        %v779 = vunpack.c.l.b16 %v412
        %v780 = vunpack.c.h.b16 %v412
        %v781 = vunpack.c.l.b16 %v413
        %v782 = vunpack.c.h.b16 %v413
        %v783 = vunpack.c.l.b16 %v414
        %v784 = vunpack.c.h.b16 %v414
        %v785 = vunpack.c.l.b16 %v415
        %v786 = vunpack.c.h.b16 %v415
        %v787 = vunpack.c.l.b16 %v416
        %v788 = vunpack.c.h.b16 %v416
        %v789 = vunpack.c.l.b16 %v417
        %v790 = vunpack.c.h.b16 %v417
        %v791 = vunpack.c.l.b16 %v418
        %v792 = vunpack.c.h.b16 %v418
        %v793 = vunpack.c.l.b16 %v419
        %v794 = vunpack.c.h.b16 %v419
        %v795 = vunpack.c.l.b16 %v420
        %v796 = vunpack.c.h.b16 %v420
        %v797 = vunpack.c.l.b16 %v421
        %v798 = vunpack.c.h.b16 %v421
        %v799 = vunpack.c.l.b16 %v422
        %v800 = vunpack.c.h.b16 %v422
        %v801 = vunpack.c.l.b16 %v423
        %v802 = vunpack.c.h.b16 %v423
        %v803 = vunpack.c.l.b16 %v424
        %v804 = vunpack.c.h.b16 %v424
        %v805 = vunpack.c.l.b16 %v425
        %v806 = vunpack.c.h.b16 %v425
        %v807 = vunpack.c.l.b16 %v426
        %v808 = vunpack.c.h.b16 %v426
        %v809 = vunpack.c.l.b16 %v427
        %v810 = vunpack.c.h.b16 %v427
        %v811 = vunpack.c.l.b16 %v428
        %v812 = vunpack.c.h.b16 %v428
        %v813 = vunpack.c.l.b16 %v429
        %v814 = vunpack.c.h.b16 %v429
        %v815 = vunpack.c.l.b16 %v430
        %v816 = vunpack.c.h.b16 %v430
        %v817 = vunpack.c.l.b16 %v431
        %v818 = vunpack.c.h.b16 %v431
        %v819 = vunpack.c.l.b16 %v432
        %v820 = vunpack.c.h.b16 %v432
        %v821 = vunpack.c.l.b16 %v433
        %v822 = vunpack.c.h.b16 %v433
        %v823 = vunpack.c.l.b16 %v434
        %v824 = vunpack.c.h.b16 %v434
        %v825 = vunpack.c.l.b16 %v435
        %v826 = vunpack.c.h.b16 %v435
        %v827 = vunpack.c.l.b16 %v436
        %v828 = vunpack.c.h.b16 %v436
        %v829 = vunpack.c.l.b16 %v437
        %v830 = vunpack.c.h.b16 %v437
        %v831 = vunpack.c.l.b16 %v438
        %v832 = vunpack.c.h.b16 %v438
        %v833 = vunpack.c.l.b16 %v439
        %v834 = vunpack.c.h.b16 %v439
        %v835 = vunpack.c.l.b16 %v440
        %v836 = vunpack.c.h.b16 %v440
        %v837 = vunpack.c.l.b16 %v441
        %v838 = vunpack.c.h.b16 %v441
        %v839 = vunpack.c.l.b16 %v442
        %v840 = vunpack.c.h.b16 %v442
        %v841 = vunpack.c.l.b16 %v443
        %v842 = vunpack.c.h.b16 %v443
        %v843 = vunpack.c.l.b16 %v444
        %v844 = vunpack.c.h.b16 %v444
        %v845 = vunpack.c.l.b16 %v445
        %v846 = vunpack.c.h.b16 %v445
        %v847 = vunpack.c.l.b16 %v446
        %v848 = vunpack.c.h.b16 %v446
        %v849 = vunpack.c.l.b16 %v447
        %v850 = vunpack.c.h.b16 %v447
        %v851 = vunpack.c.l.b16 %v448
        %v852 = vunpack.c.h.b16 %v448
        %v853 = vunpack.c.l.b16 %v449
        %v854 = vunpack.c.h.b16 %v449
        %v855 = vunpack.c.l.b16 %v450
        %v856 = vunpack.c.h.b16 %v450
        %v857 = vpack.c.b16 %v605, %v601
        %v858 = vpack.c.b16 %v606, %v602
        %v859 = vpack.c.b16 %v607, %v603
        %v860 = vpack.c.b16 %v608, %v604
        %v861 = vpack.c.b16 %v613, %v609
        %v862 = vpack.c.b16 %v614, %v610
        %v863 = vpack.c.b16 %v615, %v611
        %v864 = vpack.c.b16 %v616, %v612
        %v865 = vpack.c.b16 %v621, %v617
        %v866 = vpack.c.b16 %v622, %v618
        %v867 = vpack.c.b16 %v623, %v619
        %v868 = vpack.c.b16 %v624, %v620
        %v869 = vpack.c.b16 %v629, %v625
        %v870 = vpack.c.b16 %v630, %v626
        %v871 = vpack.c.b16 %v631, %v627
        %v872 = vpack.c.b16 %v632, %v628
        %v873 = vpack.c.b16 %v637, %v633
        %v874 = vpack.c.b16 %v638, %v634
        %v875 = vpack.c.b16 %v639, %v635
        %v876 = vpack.c.b16 %v640, %v636
        %v877 = vpack.c.b16 %v645, %v641
        %v878 = vpack.c.b16 %v646, %v642
        %v879 = vpack.c.b16 %v647, %v643
        %v880 = vpack.c.b16 %v648, %v644
        %v881 = vpack.c.b16 %v653, %v649
        %v882 = vpack.c.b16 %v654, %v650
        %v883 = vpack.c.b16 %v655, %v651
        %v884 = vpack.c.b16 %v656, %v652
        %v885 = vpack.c.b16 %v661, %v657
        %v886 = vpack.c.b16 %v662, %v658
        %v887 = vpack.c.b16 %v663, %v659
        %v888 = vpack.c.b16 %v664, %v660
        %v889 = vpack.c.b16 %v669, %v665
        %v890 = vpack.c.b16 %v670, %v666
        %v891 = vpack.c.b16 %v671, %v667
        %v892 = vpack.c.b16 %v672, %v668
        %v893 = vpack.c.b16 %v677, %v673
        %v894 = vpack.c.b16 %v678, %v674
        %v895 = vpack.c.b16 %v679, %v675
        %v896 = vpack.c.b16 %v680, %v676
        %v897 = vpack.c.b16 %v685, %v681
        %v898 = vpack.c.b16 %v686, %v682
        %v899 = vpack.c.b16 %v687, %v683
        %v900 = vpack.c.b16 %v688, %v684
        %v901 = vpack.c.b16 %v693, %v689
        %v902 = vpack.c.b16 %v694, %v690
        %v903 = vpack.c.b16 %v695, %v691
        %v904 = vpack.c.b16 %v696, %v692
        %v905 = vpack.c.b16 %v701, %v697
        %v906 = vpack.c.b16 %v702, %v698
        %v907 = vpack.c.b16 %v703, %v699
        %v908 = vpack.c.b16 %v704, %v700
        %v909 = vpack.c.b16 %v709, %v705
        %v910 = vpack.c.b16 %v710, %v706
        %v911 = vpack.c.b16 %v711, %v707
        %v912 = vpack.c.b16 %v712, %v708
        %v913 = vpack.c.b16 %v717, %v713
        %v914 = vpack.c.b16 %v718, %v714
        %v915 = vpack.c.b16 %v719, %v715
        %v916 = vpack.c.b16 %v720, %v716
        %v917 = vpack.c.b16 %v725, %v721
        %v918 = vpack.c.b16 %v726, %v722
        %v919 = vpack.c.b16 %v727, %v723
        %v920 = vpack.c.b16 %v728, %v724
        %v921 = vpack.c.b16 %v733, %v729
        %v922 = vpack.c.b16 %v734, %v730
        %v923 = vpack.c.b16 %v735, %v731
        %v924 = vpack.c.b16 %v736, %v732
        %v925 = vpack.c.b16 %v741, %v737
        %v926 = vpack.c.b16 %v742, %v738
        %v927 = vpack.c.b16 %v743, %v739
        %v928 = vpack.c.b16 %v744, %v740
        %v929 = vpack.c.b16 %v749, %v745
        %v930 = vpack.c.b16 %v750, %v746
        %v931 = vpack.c.b16 %v751, %v747
        %v932 = vpack.c.b16 %v752, %v748
        %v933 = vpack.c.b16 %v757, %v753
        %v934 = vpack.c.b16 %v758, %v754
        %v935 = vpack.c.b16 %v759, %v755
        %v936 = vpack.c.b16 %v760, %v756
        %v937 = vpack.c.b16 %v765, %v761
        %v938 = vpack.c.b16 %v766, %v762
        %v939 = vpack.c.b16 %v767, %v763
        %v940 = vpack.c.b16 %v768, %v764
        %v941 = vpack.c.b16 %v773, %v769
        %v942 = vpack.c.b16 %v774, %v770
        %v943 = vpack.c.b16 %v775, %v771
        %v944 = vpack.c.b16 %v776, %v772
        %v945 = vpack.c.b16 %v781, %v777
        %v946 = vpack.c.b16 %v782, %v778
        %v947 = vpack.c.b16 %v783, %v779
        %v948 = vpack.c.b16 %v784, %v780
        %v949 = vpack.c.b16 %v789, %v785
        %v950 = vpack.c.b16 %v790, %v786
        %v951 = vpack.c.b16 %v791, %v787
        %v952 = vpack.c.b16 %v792, %v788
        %v953 = vpack.c.b16 %v797, %v793
        %v954 = vpack.c.b16 %v798, %v794
        %v955 = vpack.c.b16 %v799, %v795
        %v956 = vpack.c.b16 %v800, %v796
        %v957 = vpack.c.b16 %v805, %v801
        %v958 = vpack.c.b16 %v806, %v802
        %v959 = vpack.c.b16 %v807, %v803
        %v960 = vpack.c.b16 %v808, %v804
        %v961 = vpack.c.b16 %v813, %v809
        %v962 = vpack.c.b16 %v814, %v810
        %v963 = vpack.c.b16 %v815, %v811
        %v964 = vpack.c.b16 %v816, %v812
        %v965 = vpack.c.b16 %v821, %v817
        %v966 = vpack.c.b16 %v822, %v818
        %v967 = vpack.c.b16 %v823, %v819
        %v968 = vpack.c.b16 %v824, %v820
        %v969 = vpack.c.b16 %v829, %v825
        %v970 = vpack.c.b16 %v830, %v826
        %v971 = vpack.c.b16 %v831, %v827
        %v972 = vpack.c.b16 %v832, %v828
        %v973 = vpack.c.b16 %v837, %v833
        %v974 = vpack.c.b16 %v838, %v834
        %v975 = vpack.c.b16 %v839, %v835
        %v976 = vpack.c.b16 %v840, %v836
        %v977 = vpack.c.b16 %v845, %v841
        %v978 = vpack.c.b16 %v846, %v842
        %v979 = vpack.c.b16 %v847, %v843
        %v980 = vpack.c.b16 %v848, %v844
        %v981 = vpack.c.b16 %v853, %v849
        %v982 = vpack.c.b16 %v854, %v850
        %v983 = vpack.c.b16 %v855, %v851
        %v984 = vpack.c.b16 %v856, %v852
        %1113 = vmatprep.subr.bf16.mxu0 %v858
        %1114 = vmatpush1.bf16.msra.mxu0 %v857
        %1115 = vmatprep.subr.bf16.mxu0 %v862
        %1116 = vmatpush1.bf16.msra.mxu0 %v861
        %1117 = vmatprep.subr.bf16.mxu0 %v866
        %1118 = vmatpush1.bf16.msra.mxu0 %v865
        %1119 = vmatprep.subr.bf16.mxu0 %v870
        %1120 = vmatpush1.bf16.msra.mxu0 %v869
        %1121 = vmatprep.subr.bf16.mxu0 %v874
        %1122 = vmatpush1.bf16.msra.mxu0 %v873
        %1123 = vmatprep.subr.bf16.mxu0 %v878
        %1124 = vmatpush1.bf16.msra.mxu0 %v877
        %1125 = vmatprep.subr.bf16.mxu0 %v882
        %1126 = vmatpush1.bf16.msra.mxu0 %v881
        %1127 = vmatprep.subr.bf16.mxu0 %v886
        %1128 = vmatpush1.bf16.msra.mxu0 %v885
        %1129 = vmatprep.subr.bf16.mxu0 %v890
        %1130 = vmatpush1.bf16.msra.mxu0 %v889
        %1131 = vmatprep.subr.bf16.mxu0 %v894
        %1132 = vmatpush1.bf16.msra.mxu0 %v893
        %1133 = vmatprep.subr.bf16.mxu0 %v898
        %1134 = vmatpush1.bf16.msra.mxu0 %v897
        %1135 = vmatprep.subr.bf16.mxu0 %v902
        %1136 = vmatpush1.bf16.msra.mxu0 %v901
        %1137 = vmatprep.subr.bf16.mxu0 %v906
        %1138 = vmatpush1.bf16.msra.mxu0 %v905
        %1139 = vmatprep.subr.bf16.mxu0 %v910
        %1140 = vmatpush1.bf16.msra.mxu0 %v909
        %1141 = vmatprep.subr.bf16.mxu0 %v914
        %1142 = vmatpush1.bf16.msra.mxu0 %v913
        %1143 = vmatprep.subr.bf16.mxu0 %v918
        %1144 = vmatpush1.bf16.msra.mxu0 %v917
        %1145 = vmatprep.mubr.bf16.mxu0 %v308
        %1146 = vmatmul.mubr.bf16.gmra.mrb[0].mxu0 %v307
        %v1147 = vpop.f32.mrb[0].mxu0
        %v1148 = vadd.f32 %v456, %v1147
        %v1149 = vpop.f32.mrb[0].mxu0
        %v1150 = vadd.f32 %v460, %v1149
        %v1151 = vpop.f32.mrb[0].mxu0
        %v1152 = vadd.f32 %v456, %v1151
        %v1153 = vpop.f32.mrb[0].mxu0
        %v1154 = vadd.f32 %v460, %v1153
        %1155 = vmatprep.mubr.bf16.mxu0 %v312
        %1156 = vmatmul.mubr.bf16.gmra.mrb[0].mxu0 %v311
        %v1157 = vpop.f32.mrb[0].mxu0
        %v1158 = vadd.f32 %v456, %v1157
        %v1159 = vpop.f32.mrb[0].mxu0
        %v1160 = vadd.f32 %v460, %v1159
        %v1161 = vpop.f32.mrb[0].mxu0
        %v1162 = vadd.f32 %v456, %v1161
        %v1163 = vpop.f32.mrb[0].mxu0
        %v1164 = vadd.f32 %v460, %v1163
        %1165 = vmatprep.mubr.bf16.mxu0 %v316
        %1166 = vmatmul.mubr.bf16.gmra.mrb[0].mxu0 %v315
        %v1167 = vpop.f32.mrb[0].mxu0
        %v1168 = vadd.f32 %v456, %v1167
        %v1169 = vpop.f32.mrb[0].mxu0
        %v1170 = vadd.f32 %v460, %v1169
        %v1171 = vpop.f32.mrb[0].mxu0
        %v1172 = vadd.f32 %v456, %v1171
        %v1173 = vpop.f32.mrb[0].mxu0
        %v1174 = vadd.f32 %v460, %v1173
        %1175 = vmatprep.mubr.bf16.mxu0 %v320
        %1176 = vmatmul.mubr.bf16.gmra.mrb[0].mxu0 %v319
        %v1177 = vpop.f32.mrb[0].mxu0
        %v1178 = vadd.f32 %v456, %v1177
        %v1179 = vpop.f32.mrb[0].mxu0
        %v1180 = vadd.f32 %v460, %v1179
        %v1181 = vpop.f32.mrb[0].mxu0
        %v1182 = vadd.f32 %v456, %v1181
        %v1183 = vpop.f32.mrb[0].mxu0
        %v1184 = vadd.f32 %v460, %v1183
        %1185 = vdwg.mxu0
        %1186 = vmatprep.subr.bf16.mxu0 %v922
        %1187 = vmatpush1.bf16.msra.mxu0 %v921
        %1188 = vmatprep.subr.bf16.mxu0 %v926
        %1189 = vmatpush1.bf16.msra.mxu0 %v925
        %1190 = vmatprep.subr.bf16.mxu0 %v930
        %1191 = vmatpush1.bf16.msra.mxu0 %v929
        %1192 = vmatprep.subr.bf16.mxu0 %v934
        %1193 = vmatpush1.bf16.msra.mxu0 %v933
        %1194 = vmatprep.subr.bf16.mxu0 %v938
        %1195 = vmatpush1.bf16.msra.mxu0 %v937
        %1196 = vmatprep.subr.bf16.mxu0 %v942
        %1197 = vmatpush1.bf16.msra.mxu0 %v941
        %1198 = vmatprep.subr.bf16.mxu0 %v946
        %1199 = vmatpush1.bf16.msra.mxu0 %v945
        %1200 = vmatprep.subr.bf16.mxu0 %v950
        %1201 = vmatpush1.bf16.msra.mxu0 %v949
        %1202 = vmatprep.subr.bf16.mxu0 %v954
        %1203 = vmatpush1.bf16.msra.mxu0 %v953
        %1204 = vmatprep.subr.bf16.mxu0 %v958
        %1205 = vmatpush1.bf16.msra.mxu0 %v957
        %1206 = vmatprep.subr.bf16.mxu0 %v962
        %1207 = vmatpush1.bf16.msra.mxu0 %v961
        %1208 = vmatprep.subr.bf16.mxu0 %v966
        %1209 = vmatpush1.bf16.msra.mxu0 %v965
        %1210 = vmatprep.subr.bf16.mxu0 %v970
        %1211 = vmatpush1.bf16.msra.mxu0 %v969
        %1212 = vmatprep.subr.bf16.mxu0 %v974
        %1213 = vmatpush1.bf16.msra.mxu0 %v973
        %1214 = vmatprep.subr.bf16.mxu0 %v978
        %1215 = vmatpush1.bf16.msra.mxu0 %v977
        %1216 = vmatprep.subr.bf16.mxu0 %v982
        %1217 = vmatpush1.bf16.msra.mxu0 %v981
        %1218 = vmatprep.mubr.bf16.mxu0 %v310
        %1219 = vmatmul.mubr.bf16.gmra.mrb[0].mxu0 %v309
        %v1220 = vpop.f32.mrb[0].mxu0
        %v1221 = vadd.f32 %v1148, %v1220
        %v1222 = vpop.f32.mrb[0].mxu0
        %v1223 = vadd.f32 %v1150, %v1222
        %v1224 = vpop.f32.mrb[0].mxu0
        %v1225 = vadd.f32 %v1152, %v1224
        %v1226 = vpop.f32.mrb[0].mxu0
        %v1227 = vadd.f32 %v1154, %v1226
        %1228 = vmatprep.mubr.bf16.mxu0 %v314
        %1229 = vmatmul.mubr.bf16.gmra.mrb[0].mxu0 %v313
        %v1230 = vpop.f32.mrb[0].mxu0
        %v1231 = vadd.f32 %v1158, %v1230
        %v1232 = vpop.f32.mrb[0].mxu0
        %v1233 = vadd.f32 %v1160, %v1232
        %v1234 = vpop.f32.mrb[0].mxu0
        %v1235 = vadd.f32 %v1162, %v1234
        %v1236 = vpop.f32.mrb[0].mxu0
        %v1237 = vadd.f32 %v1164, %v1236
        %1238 = vmatprep.mubr.bf16.mxu0 %v318
        %1239 = vmatmul.mubr.bf16.gmra.mrb[0].mxu0 %v317
        %v1240 = vpop.f32.mrb[0].mxu0
        %v1241 = vadd.f32 %v1168, %v1240
        %v1242 = vpop.f32.mrb[0].mxu0
        %v1243 = vadd.f32 %v1170, %v1242
        %v1244 = vpop.f32.mrb[0].mxu0
        %v1245 = vadd.f32 %v1172, %v1244
        %v1246 = vpop.f32.mrb[0].mxu0
        %v1247 = vadd.f32 %v1174, %v1246
        %1248 = vmatprep.mubr.bf16.mxu0 %v322
        %1249 = vmatmul.mubr.bf16.gmra.mrb[0].mxu0 %v321
        %v1250 = vpop.f32.mrb[0].mxu0
        %v1251 = vadd.f32 %v1178, %v1250
        %v1252 = vpop.f32.mrb[0].mxu0
        %v1253 = vadd.f32 %v1180, %v1252
        %v1254 = vpop.f32.mrb[0].mxu0
        %v1255 = vadd.f32 %v1182, %v1254
        %v1256 = vpop.f32.mrb[0].mxu0
        %v1257 = vadd.f32 %v1184, %v1256
        %1258 = vdwg.mxu0
        %1259 = vmatprep.subr.bf16.mxu0 %v860
        %1260 = vmatpush1.bf16.msra.mxu0 %v859
        %1261 = vmatprep.subr.bf16.mxu0 %v864
        %1262 = vmatpush1.bf16.msra.mxu0 %v863
        %1263 = vmatprep.subr.bf16.mxu0 %v868
        %1264 = vmatpush1.bf16.msra.mxu0 %v867
        %1265 = vmatprep.subr.bf16.mxu0 %v872
        %1266 = vmatpush1.bf16.msra.mxu0 %v871
        %1267 = vmatprep.subr.bf16.mxu0 %v876
        %1268 = vmatpush1.bf16.msra.mxu0 %v875
        %1269 = vmatprep.subr.bf16.mxu0 %v880
        %1270 = vmatpush1.bf16.msra.mxu0 %v879
        %1271 = vmatprep.subr.bf16.mxu0 %v884
        %1272 = vmatpush1.bf16.msra.mxu0 %v883
        %1273 = vmatprep.subr.bf16.mxu0 %v888
        %1274 = vmatpush1.bf16.msra.mxu0 %v887
        %1275 = vmatprep.subr.bf16.mxu0 %v892
        %1276 = vmatpush1.bf16.msra.mxu0 %v891
        %1277 = vmatprep.subr.bf16.mxu0 %v896
        %1278 = vmatpush1.bf16.msra.mxu0 %v895
        %1279 = vmatprep.subr.bf16.mxu0 %v900
        %1280 = vmatpush1.bf16.msra.mxu0 %v899
        %1281 = vmatprep.subr.bf16.mxu0 %v904
        %1282 = vmatpush1.bf16.msra.mxu0 %v903
        %1283 = vmatprep.subr.bf16.mxu0 %v908
        %1284 = vmatpush1.bf16.msra.mxu0 %v907
        %1285 = vmatprep.subr.bf16.mxu0 %v912
        %1286 = vmatpush1.bf16.msra.mxu0 %v911
        %1287 = vmatprep.subr.bf16.mxu0 %v916
        %1288 = vmatpush1.bf16.msra.mxu0 %v915
        %1289 = vmatprep.subr.bf16.mxu0 %v920
        %1290 = vmatpush1.bf16.msra.mxu0 %v919
        %1291 = vmatprep.mubr.bf16.mxu0 %v308
        %1292 = vmatmul.mubr.bf16.gmra.mrb[0].mxu0 %v307
        %v1293 = vpop.f32.mrb[0].mxu0
        %v1294 = vadd.f32 %v464, %v1293
        %v1295 = vpop.f32.mrb[0].mxu0
        %v1296 = vadd.f32 %v468, %v1295
        %v1297 = vpop.f32.mrb[0].mxu0
        %v1298 = vadd.f32 %v464, %v1297
        %v1299 = vpop.f32.mrb[0].mxu0
        %v1300 = vadd.f32 %v468, %v1299
        %1301 = vmatprep.mubr.bf16.mxu0 %v312
        %1302 = vmatmul.mubr.bf16.gmra.mrb[0].mxu0 %v311
        %v1303 = vpop.f32.mrb[0].mxu0
        %v1304 = vadd.f32 %v464, %v1303
        %v1305 = vpop.f32.mrb[0].mxu0
        %v1306 = vadd.f32 %v468, %v1305
        %v1307 = vpop.f32.mrb[0].mxu0
        %v1308 = vadd.f32 %v464, %v1307
        %v1309 = vpop.f32.mrb[0].mxu0
        %v1310 = vadd.f32 %v468, %v1309
        %1311 = vmatprep.mubr.bf16.mxu0 %v316
        %1312 = vmatmul.mubr.bf16.gmra.mrb[0].mxu0 %v315
        %v1313 = vpop.f32.mrb[0].mxu0
        %v1314 = vadd.f32 %v464, %v1313
        %v1315 = vpop.f32.mrb[0].mxu0
        %v1316 = vadd.f32 %v468, %v1315
        %v1317 = vpop.f32.mrb[0].mxu0
        %v1318 = vadd.f32 %v464, %v1317
        %v1319 = vpop.f32.mrb[0].mxu0
        %v1320 = vadd.f32 %v468, %v1319
        %1321 = vmatprep.mubr.bf16.mxu0 %v320
        %1322 = vmatmul.mubr.bf16.gmra.mrb[0].mxu0 %v319
        %v1323 = vpop.f32.mrb[0].mxu0
        %v1324 = vadd.f32 %v464, %v1323
        %v1325 = vpop.f32.mrb[0].mxu0
        %v1326 = vadd.f32 %v468, %v1325
        %v1327 = vpop.f32.mrb[0].mxu0
        %v1328 = vadd.f32 %v464, %v1327
        %v1329 = vpop.f32.mrb[0].mxu0
        %v1330 = vadd.f32 %v468, %v1329
        %1331 = vdwg.mxu0
        %1332 = vmatprep.subr.bf16.mxu0 %v924
        %1333 = vmatpush1.bf16.msra.mxu0 %v923
        %1334 = vmatprep.subr.bf16.mxu0 %v928
        %1335 = vmatpush1.bf16.msra.mxu0 %v927
        %1336 = vmatprep.subr.bf16.mxu0 %v932
        %1337 = vmatpush1.bf16.msra.mxu0 %v931
        %1338 = vmatprep.subr.bf16.mxu0 %v936
        %1339 = vmatpush1.bf16.msra.mxu0 %v935
        %1340 = vmatprep.subr.bf16.mxu0 %v940
        %1341 = vmatpush1.bf16.msra.mxu0 %v939
        %1342 = vmatprep.subr.bf16.mxu0 %v944
        %1343 = vmatpush1.bf16.msra.mxu0 %v943
        %1344 = vmatprep.subr.bf16.mxu0 %v948
        %1345 = vmatpush1.bf16.msra.mxu0 %v947
        %1346 = vmatprep.subr.bf16.mxu0 %v952
        %1347 = vmatpush1.bf16.msra.mxu0 %v951
        %1348 = vmatprep.subr.bf16.mxu0 %v956
        %1349 = vmatpush1.bf16.msra.mxu0 %v955
        %1350 = vmatprep.subr.bf16.mxu0 %v960
        %1351 = vmatpush1.bf16.msra.mxu0 %v959
        %1352 = vmatprep.subr.bf16.mxu0 %v964
        %1353 = vmatpush1.bf16.msra.mxu0 %v963
        %1354 = vmatprep.subr.bf16.mxu0 %v968
        %1355 = vmatpush1.bf16.msra.mxu0 %v967
        %1356 = vmatprep.subr.bf16.mxu0 %v972
        %1357 = vmatpush1.bf16.msra.mxu0 %v971
        %1358 = vmatprep.subr.bf16.mxu0 %v976
        %1359 = vmatpush1.bf16.msra.mxu0 %v975
        %1360 = vmatprep.subr.bf16.mxu0 %v980
        %1361 = vmatpush1.bf16.msra.mxu0 %v979
        %1362 = vmatprep.subr.bf16.mxu0 %v984
        %1363 = vmatpush1.bf16.msra.mxu0 %v983
        %1364 = vmatprep.mubr.bf16.mxu0 %v310
        %1365 = vmatmul.mubr.bf16.gmra.mrb[0].mxu0 %v309
        %v1366 = vpop.f32.mrb[0].mxu0
        %v1367 = vadd.f32 %v1294, %v1366
        %v1368 = vpop.f32.mrb[0].mxu0
        %v1369 = vadd.f32 %v1296, %v1368
        %v1370 = vpop.f32.mrb[0].mxu0
        %v1371 = vadd.f32 %v1298, %v1370
        %v1372 = vpop.f32.mrb[0].mxu0
        %v1373 = vadd.f32 %v1300, %v1372
        %1374 = vmatprep.mubr.bf16.mxu0 %v314
        %1375 = vmatmul.mubr.bf16.gmra.mrb[0].mxu0 %v313
        %v1376 = vpop.f32.mrb[0].mxu0
        %v1377 = vadd.f32 %v1304, %v1376
        %v1378 = vpop.f32.mrb[0].mxu0
        %v1379 = vadd.f32 %v1306, %v1378
        %v1380 = vpop.f32.mrb[0].mxu0
        %v1381 = vadd.f32 %v1308, %v1380
        %v1382 = vpop.f32.mrb[0].mxu0
        %v1383 = vadd.f32 %v1310, %v1382
        %1384 = vmatprep.mubr.bf16.mxu0 %v318
        %1385 = vmatmul.mubr.bf16.gmra.mrb[0].mxu0 %v317
        %v1386 = vpop.f32.mrb[0].mxu0
        %v1387 = vadd.f32 %v1314, %v1386
        %v1388 = vpop.f32.mrb[0].mxu0
        %v1389 = vadd.f32 %v1316, %v1388
        %v1390 = vpop.f32.mrb[0].mxu0
        %v1391 = vadd.f32 %v1318, %v1390
        %v1392 = vpop.f32.mrb[0].mxu0
        %v1393 = vadd.f32 %v1320, %v1392
        %1394 = vmatprep.mubr.bf16.mxu0 %v322
        %1395 = vmatmul.mubr.bf16.gmra.mrb[0].mxu0 %v321
        %v1396 = vpop.f32.mrb[0].mxu0
        %v1397 = vadd.f32 %v1324, %v1396
        %v1398 = vpop.f32.mrb[0].mxu0
        %v1399 = vadd.f32 %v1326, %v1398
        %v1400 = vpop.f32.mrb[0].mxu0
        %v1401 = vadd.f32 %v1328, %v1400
        %v1402 = vpop.f32.mrb[0].mxu0
        %v1403 = vadd.f32 %v1330, %v1402
        %1404 = vdwg.mxu0
        %v1405 = vmax.f32 %v1221, 0.0
        %v1406 = vmax.f32 %v1223, 0.0
        %v1407 = vmax.f32 %v1225, 0.0
        %v1408 = vmax.f32 %v1227, 0.0
        %v1409 = vmax.f32 %v1231, 0.0
        %v1410 = vmax.f32 %v1233, 0.0
        %v1411 = vmax.f32 %v1235, 0.0
        %v1412 = vmax.f32 %v1237, 0.0
        %v1413 = vmax.f32 %v1241, 0.0
        %v1414 = vmax.f32 %v1243, 0.0
        %v1415 = vmax.f32 %v1245, 0.0
        %v1416 = vmax.f32 %v1247, 0.0
        %v1417 = vmax.f32 %v1251, 0.0
        %v1418 = vmax.f32 %v1253, 0.0
        %v1419 = vmax.f32 %v1255, 0.0
        %v1420 = vmax.f32 %v1257, 0.0
        %v1421 = vmax.f32 %v1367, 0.0
        %v1422 = vmax.f32 %v1369, 0.0
        %v1423 = vmax.f32 %v1371, 0.0
        %v1424 = vmax.f32 %v1373, 0.0
        %v1425 = vmax.f32 %v1377, 0.0
        %v1426 = vmax.f32 %v1379, 0.0
        %v1427 = vmax.f32 %v1381, 0.0
        %v1428 = vmax.f32 %v1383, 0.0
        %v1429 = vmax.f32 %v1387, 0.0
        %v1430 = vmax.f32 %v1389, 0.0
        %v1431 = vmax.f32 %v1391, 0.0
        %v1432 = vmax.f32 %v1393, 0.0
        %v1433 = vmax.f32 %v1397, 0.0
        %v1434 = vmax.f32 %v1399, 0.0
        %v1435 = vmax.f32 %v1401, 0.0
        %v1436 = vmax.f32 %v1403, 0.0
        %v1437 = vpack.c.bf16 %v1407, %v1405
        %v1438 = vpack.c.bf16 %v1408, %v1406
        %v1439 = vpack.c.bf16 %v1411, %v1409
        %v1440 = vpack.c.bf16 %v1412, %v1410
        %v1441 = vpack.c.bf16 %v1415, %v1413
        %v1442 = vpack.c.bf16 %v1416, %v1414
        %v1443 = vpack.c.bf16 %v1419, %v1417
        %v1444 = vpack.c.bf16 %v1420, %v1418
        %v1445 = vld [vmem:[#allocation7] sm:$0xff]
        %v1446 = vld [vmem:[#allocation7 + $0x8] sm:$0xff]
        %v1447 = vld [vmem:[#allocation7 + $0x10] sm:$0xff]
        %v1448 = vld [vmem:[#allocation7 + $0x18] sm:$0xff]
        %v1449 = vld [vmem:[#allocation7 + $0x20] sm:$0xff]
        %v1450 = vld [vmem:[#allocation7 + $0x28] sm:$0xff]
        %v1451 = vld [vmem:[#allocation7 + $0x30] sm:$0xff]
        %v1452 = vld [vmem:[#allocation7 + $0x38] sm:$0xff]
        %v1453 = vld [vmem:[#allocation7 + $0x40] sm:$0xff]
        %v1454 = vld [vmem:[#allocation7 + $0x48] sm:$0xff]
        %v1455 = vld [vmem:[#allocation7 + $0x50] sm:$0xff]
        %v1456 = vld [vmem:[#allocation7 + $0x58] sm:$0xff]
        %v1457 = vld [vmem:[#allocation7 + $0x60] sm:$0xff]
        %v1458 = vld [vmem:[#allocation7 + $0x68] sm:$0xff]
        %v1459 = vld [vmem:[#allocation7 + $0x70] sm:$0xff]
        %v1460 = vld [vmem:[#allocation7 + $0x78] sm:$0xff]
        %v1461 = vld [vmem:[#allocation7 + $0x80] sm:$0xff]
        %v1462 = vld [vmem:[#allocation7 + $0x88] sm:$0xff]
        %v1463 = vld [vmem:[#allocation7 + $0x90] sm:$0xff]
        %v1464 = vld [vmem:[#allocation7 + $0x98] sm:$0xff]
        %v1465 = vld [vmem:[#allocation7 + $0xa0] sm:$0xff]
        %v1466 = vld [vmem:[#allocation7 + $0xa8] sm:$0xff]
        %v1467 = vld [vmem:[#allocation7 + $0xb0] sm:$0xff]
        %v1468 = vld [vmem:[#allocation7 + $0xb8] sm:$0xff]
        %v1469 = vld [vmem:[#allocation7 + $0xc0] sm:$0xff]
        %v1470 = vld [vmem:[#allocation7 + $0xc8] sm:$0xff]
        %v1471 = vld [vmem:[#allocation7 + $0xd0] sm:$0xff]
        %v1472 = vld [vmem:[#allocation7 + $0xd8] sm:$0xff]
        %v1473 = vld [vmem:[#allocation7 + $0xe0] sm:$0xff]
        %v1474 = vld [vmem:[#allocation7 + $0xe8] sm:$0xff]
        %v1475 = vld [vmem:[#allocation7 + $0xf0] sm:$0xff]
        %v1476 = vld [vmem:[#allocation7 + $0xf8] sm:$0xff]
        %v1477 = vld [vmem:[%s4] sm:$0x3]
        %v1479 = vlaneseq
        %v1480 = vshrl.u32 %v1479, 7
        %v1481 = vsub.s32 0, %v1480
        %v1482 = vrot.slane %v1477, %v1481
        %v1483 = vlaneseq
        %v1484 = vshrl.u32 %v1483, 7
        %v1485 = vsub.s32 1, %v1484
        %v1486 = vrot.slane %v1477, %v1485
        %v1521 = vunpack.c.l.b16 %v1445
        %v1522 = vunpack.c.h.b16 %v1445
        %v1523 = vunpack.c.l.b16 %v1446
        %v1524 = vunpack.c.h.b16 %v1446
        %v1525 = vunpack.c.l.b16 %v1447
        %v1526 = vunpack.c.h.b16 %v1447
        %v1527 = vunpack.c.l.b16 %v1448
        %v1528 = vunpack.c.h.b16 %v1448
        %v1529 = vunpack.c.l.b16 %v1449
        %v1530 = vunpack.c.h.b16 %v1449
        %v1531 = vunpack.c.l.b16 %v1450
        %v1532 = vunpack.c.h.b16 %v1450
        %v1533 = vunpack.c.l.b16 %v1451
        %v1534 = vunpack.c.h.b16 %v1451
        %v1535 = vunpack.c.l.b16 %v1452
        %v1536 = vunpack.c.h.b16 %v1452
        %v1537 = vunpack.c.l.b16 %v1453
        %v1538 = vunpack.c.h.b16 %v1453
        %v1539 = vunpack.c.l.b16 %v1454
        %v1540 = vunpack.c.h.b16 %v1454
        %v1541 = vunpack.c.l.b16 %v1455
        %v1542 = vunpack.c.h.b16 %v1455
        %v1543 = vunpack.c.l.b16 %v1456
        %v1544 = vunpack.c.h.b16 %v1456
        %v1545 = vunpack.c.l.b16 %v1457
        %v1546 = vunpack.c.h.b16 %v1457
        %v1547 = vunpack.c.l.b16 %v1458
        %v1548 = vunpack.c.h.b16 %v1458
        %v1549 = vunpack.c.l.b16 %v1459
        %v1550 = vunpack.c.h.b16 %v1459
        %v1551 = vunpack.c.l.b16 %v1460
        %v1552 = vunpack.c.h.b16 %v1460
        %v1553 = vunpack.c.l.b16 %v1461
        %v1554 = vunpack.c.h.b16 %v1461
        %v1555 = vunpack.c.l.b16 %v1462
        %v1556 = vunpack.c.h.b16 %v1462
        %v1557 = vunpack.c.l.b16 %v1463
        %v1558 = vunpack.c.h.b16 %v1463
        %v1559 = vunpack.c.l.b16 %v1464
        %v1560 = vunpack.c.h.b16 %v1464
        %v1561 = vunpack.c.l.b16 %v1465
        %v1562 = vunpack.c.h.b16 %v1465
        %v1563 = vunpack.c.l.b16 %v1466
        %v1564 = vunpack.c.h.b16 %v1466
        %v1565 = vunpack.c.l.b16 %v1467
        %v1566 = vunpack.c.h.b16 %v1467
        %v1567 = vunpack.c.l.b16 %v1468
        %v1568 = vunpack.c.h.b16 %v1468
        %v1569 = vunpack.c.l.b16 %v1469
        %v1570 = vunpack.c.h.b16 %v1469
        %v1571 = vunpack.c.l.b16 %v1470
        %v1572 = vunpack.c.h.b16 %v1470
        %v1573 = vunpack.c.l.b16 %v1471
        %v1574 = vunpack.c.h.b16 %v1471
        %v1575 = vunpack.c.l.b16 %v1472
        %v1576 = vunpack.c.h.b16 %v1472
        %v1577 = vunpack.c.l.b16 %v1473
        %v1578 = vunpack.c.h.b16 %v1473
        %v1579 = vunpack.c.l.b16 %v1474
        %v1580 = vunpack.c.h.b16 %v1474
        %v1581 = vunpack.c.l.b16 %v1475
        %v1582 = vunpack.c.h.b16 %v1475
        %v1583 = vunpack.c.l.b16 %v1476
        %v1584 = vunpack.c.h.b16 %v1476
        %v1585 = vpack.c.b16 %v1523, %v1521
        %v1586 = vpack.c.b16 %v1524, %v1522
        %v1587 = vpack.c.b16 %v1527, %v1525
        %v1588 = vpack.c.b16 %v1528, %v1526
        %v1589 = vpack.c.b16 %v1531, %v1529
        %v1590 = vpack.c.b16 %v1532, %v1530
        %v1591 = vpack.c.b16 %v1535, %v1533
        %v1592 = vpack.c.b16 %v1536, %v1534
        %v1593 = vpack.c.b16 %v1539, %v1537
        %v1594 = vpack.c.b16 %v1540, %v1538
        %v1595 = vpack.c.b16 %v1543, %v1541
        %v1596 = vpack.c.b16 %v1544, %v1542
        %v1597 = vpack.c.b16 %v1547, %v1545
        %v1598 = vpack.c.b16 %v1548, %v1546
        %v1599 = vpack.c.b16 %v1551, %v1549
        %v1600 = vpack.c.b16 %v1552, %v1550
        %v1601 = vpack.c.b16 %v1555, %v1553
        %v1602 = vpack.c.b16 %v1556, %v1554
        %v1603 = vpack.c.b16 %v1559, %v1557
        %v1604 = vpack.c.b16 %v1560, %v1558
        %v1605 = vpack.c.b16 %v1563, %v1561
        %v1606 = vpack.c.b16 %v1564, %v1562
        %v1607 = vpack.c.b16 %v1567, %v1565
        %v1608 = vpack.c.b16 %v1568, %v1566
        %v1609 = vpack.c.b16 %v1571, %v1569
        %v1610 = vpack.c.b16 %v1572, %v1570
        %v1611 = vpack.c.b16 %v1575, %v1573
        %v1612 = vpack.c.b16 %v1576, %v1574
        %v1613 = vpack.c.b16 %v1579, %v1577
        %v1614 = vpack.c.b16 %v1580, %v1578
        %v1615 = vpack.c.b16 %v1583, %v1581
        %v1616 = vpack.c.b16 %v1584, %v1582
        %1649 = vmatprep.subr.bf16.mxu0 %v1586
        %1650 = vmatpush1.bf16.msra.mxu0 %v1585
        %1651 = vmatprep.subr.bf16.mxu0 %v1588
        %1652 = vmatpush1.bf16.msra.mxu0 %v1587
        %1653 = vmatprep.subr.bf16.mxu0 %v1590
        %1654 = vmatpush1.bf16.msra.mxu0 %v1589
        %1655 = vmatprep.subr.bf16.mxu0 %v1592
        %1656 = vmatpush1.bf16.msra.mxu0 %v1591
        %1657 = vmatprep.subr.bf16.mxu0 %v1594
        %1658 = vmatpush1.bf16.msra.mxu0 %v1593
        %1659 = vmatprep.subr.bf16.mxu0 %v1596
        %1660 = vmatpush1.bf16.msra.mxu0 %v1595
        %1661 = vmatprep.subr.bf16.mxu0 %v1598
        %1662 = vmatpush1.bf16.msra.mxu0 %v1597
        %1663 = vmatprep.subr.bf16.mxu0 %v1600
        %1664 = vmatpush1.bf16.msra.mxu0 %v1599
        %1665 = vmatprep.subr.bf16.mxu0 %v1602
        %1666 = vmatpush1.bf16.msra.mxu0 %v1601
        %1667 = vmatprep.subr.bf16.mxu0 %v1604
        %1668 = vmatpush1.bf16.msra.mxu0 %v1603
        %1669 = vmatprep.subr.bf16.mxu0 %v1606
        %1670 = vmatpush1.bf16.msra.mxu0 %v1605
        %1671 = vmatprep.subr.bf16.mxu0 %v1608
        %1672 = vmatpush1.bf16.msra.mxu0 %v1607
        %1673 = vmatprep.subr.bf16.mxu0 %v1610
        %1674 = vmatpush1.bf16.msra.mxu0 %v1609
        %1675 = vmatprep.subr.bf16.mxu0 %v1612
        %1676 = vmatpush1.bf16.msra.mxu0 %v1611
        %1677 = vmatprep.subr.bf16.mxu0 %v1614
        %1678 = vmatpush1.bf16.msra.mxu0 %v1613
        %1679 = vmatprep.subr.bf16.mxu0 %v1616
        %1680 = vmatpush1.bf16.msra.mxu0 %v1615
        %1681 = vmatprep.mubr.bf16.mxu0 %v1438
        %1682 = vmatmul.mubr.bf16.gmra.mrb[0].mxu0 %v1437
        %v1683 = vpop.f32.mrb[0].mxu0
        %v1684 = vadd.f32 %v1482, %v1683
        %v1685 = vpop.f32.mrb[0].mxu0
        %v1686 = vadd.f32 %v1486, %v1685
        %v1687 = vpop.f32.mrb[0].mxu0
        %v1688 = vadd.f32 %v1482, %v1687
        %v1689 = vpop.f32.mrb[0].mxu0
        %v1690 = vadd.f32 %v1486, %v1689
        %1691 = vmatprep.mubr.bf16.mxu0 %v1440
        %1692 = vmatmul.mubr.bf16.gmra.mrb[0].mxu0 %v1439
        %v1693 = vpop.f32.mrb[0].mxu0
        %v1694 = vadd.f32 %v1482, %v1693
        %v1695 = vpop.f32.mrb[0].mxu0
        %v1696 = vadd.f32 %v1486, %v1695
        %v1697 = vpop.f32.mrb[0].mxu0
        %v1698 = vadd.f32 %v1482, %v1697
        %v1699 = vpop.f32.mrb[0].mxu0
        %v1700 = vadd.f32 %v1486, %v1699
        %1701 = vmatprep.mubr.bf16.mxu0 %v1442
        %1702 = vmatmul.mubr.bf16.gmra.mrb[0].mxu0 %v1441
        %v1703 = vpop.f32.mrb[0].mxu0
        %v1704 = vadd.f32 %v1482, %v1703
        %v1705 = vpop.f32.mrb[0].mxu0
        %v1706 = vadd.f32 %v1486, %v1705
        %v1707 = vpop.f32.mrb[0].mxu0
        %v1708 = vadd.f32 %v1482, %v1707
        %v1709 = vpop.f32.mrb[0].mxu0
        %v1710 = vadd.f32 %v1486, %v1709
        %1711 = vmatprep.mubr.bf16.mxu0 %v1444
        %1712 = vmatmul.mubr.bf16.gmra.mrb[0].mxu0 %v1443
        %v1713 = vpop.f32.mrb[0].mxu0
        %v1714 = vadd.f32 %v1482, %v1713
        %v1715 = vpop.f32.mrb[0].mxu0
        %v1716 = vadd.f32 %v1486, %v1715
        %v1717 = vpop.f32.mrb[0].mxu0
        %v1718 = vadd.f32 %v1482, %v1717
        %v1719 = vpop.f32.mrb[0].mxu0
        %v1720 = vadd.f32 %v1486, %v1719
        %1721 = vdwg.mxu0
        %v1722 = vadd.f32 %v1421, %v1684
        %v1723 = vadd.f32 %v1422, %v1686
        %v1724 = vadd.f32 %v1423, %v1688
        %v1725 = vadd.f32 %v1424, %v1690
        %v1726 = vadd.f32 %v1425, %v1694
        %v1727 = vadd.f32 %v1426, %v1696
        %v1728 = vadd.f32 %v1427, %v1698
        %v1729 = vadd.f32 %v1428, %v1700
        %v1730 = vadd.f32 %v1429, %v1704
        %v1731 = vadd.f32 %v1430, %v1706
        %v1732 = vadd.f32 %v1431, %v1708
        %v1733 = vadd.f32 %v1432, %v1710
        %v1734 = vadd.f32 %v1433, %v1714
        %v1735 = vadd.f32 %v1434, %v1716
        %v1736 = vadd.f32 %v1435, %v1718
        %v1737 = vadd.f32 %v1436, %v1720
        %v1738 = vmax.f32 %v1722, 0.0
        %v1739 = vmax.f32 %v1723, 0.0
        %v1740 = vmax.f32 %v1724, 0.0
        %v1741 = vmax.f32 %v1725, 0.0
        %v1742 = vmax.f32 %v1726, 0.0
        %v1743 = vmax.f32 %v1727, 0.0
        %v1744 = vmax.f32 %v1728, 0.0
        %v1745 = vmax.f32 %v1729, 0.0
        %v1746 = vmax.f32 %v1730, 0.0
        %v1747 = vmax.f32 %v1731, 0.0
        %v1748 = vmax.f32 %v1732, 0.0
        %v1749 = vmax.f32 %v1733, 0.0
        %v1750 = vmax.f32 %v1734, 0.0
        %v1751 = vmax.f32 %v1735, 0.0
        %v1752 = vmax.f32 %v1736, 0.0
        %v1753 = vmax.f32 %v1737, 0.0
        %1754 = vst [vmem:[%s272] sm:$0xff] %v1738
        %1755 = vst [vmem:[%s272 + $0x8] sm:$0xff] %v1739
        %1756 = vst [vmem:[%s272 + $0x10] sm:$0xff] %v1740
        %1757 = vst [vmem:[%s272 + $0x18] sm:$0xff] %v1741
        %1758 = vst [vmem:[%s272 + $0x20] sm:$0xff] %v1742
        %1759 = vst [vmem:[%s272 + $0x28] sm:$0xff] %v1743
        %1760 = vst [vmem:[%s272 + $0x30] sm:$0xff] %v1744
        %1761 = vst [vmem:[%s272 + $0x38] sm:$0xff] %v1745
        %1762 = vst [vmem:[%s272 + $0x40] sm:$0xff] %v1746
        %1763 = vst [vmem:[%s272 + $0x48] sm:$0xff] %v1747
        %1764 = vst [vmem:[%s272 + $0x50] sm:$0xff] %v1748
        %1765 = vst [vmem:[%s272 + $0x58] sm:$0xff] %v1749
        %1766 = vst [vmem:[%s272 + $0x60] sm:$0xff] %v1750
        %1767 = vst [vmem:[%s272 + $0x68] sm:$0xff] %v1751
        %1768 = vst [vmem:[%s272 + $0x70] sm:$0xff] %v1752
        %1769 = vst [vmem:[%s272 + $0x78] sm:$0xff] %v1753
        %s1770 = sand.u32 %s141, 1
        %s1771 = scalar_lea.sflag [#allocation4], %s1770
        %s1772 = sand.u32 %s141, 1
        %s1773 = smul.addr %s1772, 128
        %s1774 = scalar_lea.vmem [#allocation8], %s1773
        // Predicated region
        $region53: #{tpu_custom_call.1} parent=39 // pred_check
          %p1775 = pneg %p151
        $region54: #{tpu_custom_call.1} parent=39 // pred_check_branch
          %1777 = sbr.rel (%p1775) target = $region56
        $region55: #{tpu_custom_call.1} parent=39 // pred_region
          %s1778 = smul.u32 8, %s23
          %s1780 = ssub.s32 2048, 2048
          %1781 = vsyncadd %s1771, %s1780
          %s1782 = smul.addr %s1778, 2
          %s1783 = smul.addr %s1782, 128
          %s1784 = scalar_lea.hbm %s5, %s1783
          %s1785 = sshll.u32 %s1774, 4
          %s1786 = int_to_ptr.vmem [resolvable:$true] %s1785
          %1791 = dma.vmem_to_hbm [thread:$0]  %s1786, 2048, %s1784, %s1771, 256, 256, 16
        $region56: #{tpu_custom_call.1} parent=39 // pred_fallthru
          _
      $region40: #{tpu_custom_call.1} parent=5 // pred_fallthru
        _
      %p1792 = scmp.le.s32.totalorder 2, %s18
      // Predicated region
      $region57: #{tpu_custom_call.1} parent=5 // pred_check
        %p1793 = pneg %p1792
      $region58: #{tpu_custom_call.1} parent=5 // pred_check_branch
        %1795 = sbr.rel (%p1793) target = $region60
      $region59: #{tpu_custom_call.1} parent=5 // pred_region
        %s1796 = ssub.s32 %s18, 2
        // Predicated region
        $region61: #{tpu_custom_call.1} parent=59 // pred_check
          %p1797 = pneg %p157
        $region62: #{tpu_custom_call.1} parent=59 // pred_check_branch
          %1799 = sbr.rel (%p1797) target = $region64
        $region63: #{tpu_custom_call.1} parent=59 // pred_region
          %s1800 = sand.u32 %s142, 1
          %s1801 = scalar_lea.sflag [#allocation4], %s1800
          %s1802 = sand.u32 %s142, 1
          %s1803 = smul.addr %s1802, 128
          %s1804 = scalar_lea.vmem [#allocation8], %s1803
          %1805 = dma.done %s1801, 2048
        $region64: #{tpu_custom_call.1} parent=59 // pred_fallthru
          _
      $region60: #{tpu_custom_call.1} parent=5 // pred_fallthru
        _
    $region6: #{tpu_custom_call.1} parent=1 // loop_footer
      %s22 = sadd.s32 1, %s18
    $region7: #{tpu_custom_call.1} parent=1 // loop_footer_branch
      %17 = sbr.rel target = $region3
    $region8: #{tpu_custom_call.1} parent=1 // loop_exit
      _
    %1806 = vsyncpa [#allocation3], 1
    %s1807 = scalar_lea.sflag [#allocation3], 1
    %1808 = vsyncpa %s1807, 1
    %1809 = vsyncpa [#allocation6], 1
    %1810 = vsyncpa [#allocation4], 1
    %s1811 = scalar_lea.sflag [#allocation4], 1
    %1812 = vsyncpa %s1811, 1

</llo_original>
